<compile_context>
chip_gen: v5e
topology: v5e:2x2
jax: 0.10.0
libtpu: 0.0.40
codegen_flags: <defaults>
</compile_context>

<pallas_src>
import functools

import jax
import jax.numpy as jnp
from jax.experimental import pallas as pl
from jax.experimental.pallas import tpu as pltpu

ATTN_LANES = 128                       # attention-hidden slice (A=64 real + zero pad)
HEAD_LANES = 128                       # fused head / output block width
FUSED_LANES = ATTN_LANES + HEAD_LANES  # fused per-stream weight width (2 x 128)


def _round_up(x, m):
    return ((x + m - 1) // m) * m


def _multitask_kernel(
    mask_ref,    # (TB, 1)            f32   1.0 if history text present else 0.0
    hist_ref,    # (TB, H)            bf16
    cur_ref,     # (TB, H)            bf16
    wfh_ref,     # (H, FUSED_LANES)   bf16  [W1_hist | 0 | W_heads | 0]
    wfc_ref,     # (H, FUSED_LANES)   bf16  [W1_cur  | 0 | W_heads | 0]
    b1_ref,      # (1, ATTN_LANES)    f32   attention bias, zero-padded past A
    w2d_ref,     # (ATTN_LANES, 1)    f32   w2[:,1]-w2[:,0], zero-padded past A
    b2d_ref,     # (1, 1)             f32   b2[1]-b2[0]
    bh_ref,      # (1, HEAD_LANES)    f32   fused [bs|br|bc|0...] biases
    out_ref,     # (TB, HEAD_LANES)   f32   [sent | resp | crisis | a0 a1 | 0...]
    *,
    attn_col,    # static int: lane where the attention weights land
):
    cur = cur_ref[...]
    # history_rep[i] = current_rep[i] when history is None / ''.  Must be done
    # pre-matmul: masked rows need cur @ W1_hist in the attention slice, which a
    # post-matmul select of P_hist/P_cur cannot produce (W1_hist != W1_cur).
    hist = jnp.where(mask_ref[...] > 0.5, hist_ref[...], cur)

    # One fused matmul per stream (bf16 operands, f32 accumulation):
    #   lanes [0:128)   attention Linear(2H, 64) contribution (64 real + pad)
    #   lanes [128:256) fused sentiment/response/crisis heads (7 real + pad)
    p_h = jnp.dot(hist, wfh_ref[...], preferred_element_type=jnp.float32)
    p_c = jnp.dot(cur, wfc_ref[...], preferred_element_type=jnp.float32)

    # attention_layer + 2-way softmax in the sigmoid form a0 = 1/(1+exp(s1-s0)),
    # driven by the pre-differenced (A,1) weight.  exp overflow at large |d|
    # saturates a0 to exactly 0/1 — the softmax limit (acceptable for eval).
    a_hidden = jnp.tanh(p_h[:, :ATTN_LANES] + p_c[:, :ATTN_LANES] + b1_ref[...])
    d = jnp.dot(a_hidden, w2d_ref[...], preferred_element_type=jnp.float32) + b2d_ref[...]
    a0 = 1.0 / (1.0 + jnp.exp(d))          # (TB, 1) f32
    a1 = 1.0 - a0

    # combined_rep @ W_heads == a0*(hist @ W_heads) + a1*(cur @ W_heads): the
    # (TB, H) f32 'combined' temporary and its bf16 re-cast are eliminated and
    # the attention combine runs on 128 lanes instead of H.
    # nn.Dropout(0.3) is identity in eval mode.
    # TODO(synk): training-mode dropout (pltpu.prng_random_bits mask) not implemented.
    head = a0 * p_h[:, ATTN_LANES:] + a1 * p_c[:, ATTN_LANES:] + bh_ref[...]

    # Single lane-dense 128-wide store: heads in lanes [0, attn_col), attention
    # weights in lanes attn_col / attn_col+1 (avoids masked partial stores).
    lane = jax.lax.broadcasted_iota(jnp.int32, out_ref.shape, 1)
    out_ref[...] = jnp.where(lane == attn_col, a0,
                             jnp.where(lane == attn_col + 1, a1, head))


def prepare_params(params, *, weight_dtype=jnp.bfloat16):
    """One-time repack: split W1, difference W2, fuse heads into each stream's weight."""
    H2, A = params["w1"].shape
    H = H2 // 2
    n_sent = params["ws"].shape[1]
    n_resp = params["wr"].shape[1]
    n_cri = params["wc"].shape[1]
    assert A <= ATTN_LANES
    assert n_sent + n_resp + n_cri + 2 <= HEAD_LANES

    def fuse(w1_half):
        wf = jnp.zeros((H, FUSED_LANES), jnp.float32)
        wf = wf.at[:, :A].set(w1_half)
        c = ATTN_LANES
        wf = wf.at[:, c:c + n_sent].set(params["ws"]); c += n_sent
        wf = wf.at[:, c:c + n_resp].set(params["wr"]); c += n_resp
        wf = wf.at[:, c:c + n_cri].set(params["wc"])
        return wf.astype(weight_dtype)

    b1 = jnp.zeros((1, ATTN_LANES), jnp.float32).at[:, :A].set(params["b1"])
    w2d = jnp.zeros((ATTN_LANES, 1), jnp.float32).at[:A, :].set(
        params["w2"][:, 1:2] - params["w2"][:, 0:1])
    b2d = (params["b2"][:, 1:2] - params["b2"][:, 0:1]).astype(jnp.float32)

    b_heads = jnp.zeros((1, HEAD_LANES), jnp.float32)
    c = 0
    b_heads = b_heads.at[:, c:c + n_sent].set(params["bs"]); c += n_sent
    b_heads = b_heads.at[:, c:c + n_resp].set(params["br"]); c += n_resp
    b_heads = b_heads.at[:, c:c + n_cri].set(params["bc"])

    return {
        "wf_hist": fuse(params["w1"][:H, :]),
        "wf_cur": fuse(params["w1"][H:, :]),
        "b1": b1,
        "w2d": w2d,
        "b2d": b2d,
        "b_heads": b_heads,
        "n_sent": n_sent,
        "n_resp": n_resp,
        "n_cri": n_cri,
    }


def _vmem_limit_bytes(TB, H, emb_itemsize, w_itemsize):
    """Conservative per-step VMEM estimate (assumes double-buffered weights)."""
    emb = 2 * 2 * TB * H * emb_itemsize                 # hist + cur, double-buffered
    mask = 2 * TB * 128 * 4                             # (TB,1) f32 tile, lane-padded
    wts = 2 * 2 * H * FUSED_LANES * w_itemsize          # wf_hist + wf_cur
    out = 2 * TB * HEAD_LANES * 4                       # output, double-buffered
    tmp = 2 * TB * FUSED_LANES * 4 + 6 * TB * ATTN_LANES * 4  # p_h/p_c + elementwise temps
    est = emb + mask + wts + out + tmp + (1 << 20)
    # Clamp to [32 MiB, 64 MiB]: above v5e's 16 MiB / v6e's 32 MiB default scoped
    # limits, never above v7x's 64 MiB physical VMEM.
    return max(32 << 20, min(int(est * 1.25) + (4 << 20), 64 << 20))


def multitask_classifier_forward(mask, history_rep, current_rep, prepared, *,
                                 block_b=512, vmem_limit_bytes=None,
                                 single_buffer_weights=True):
    """Runs the MultitaskClassifier head as a batch-gridded Pallas kernel.

    mask:        (B, 1) f32   — 1.0 where the example has non-empty history
    history_rep: (B, H) bf16  — encoder embedding of the history text
    current_rep: (B, H) bf16  — encoder embedding of the current text
    prepared:    dict from prepare_params().
    """
    B, H = history_rep.shape
    n_sent = prepared["n_sent"]
    n_resp = prepared["n_resp"]
    n_cri = prepared["n_cri"]
    attn_col = n_sent + n_resp + n_cri

    # Batch tile: multiple of 8 sublanes; 512 rows ~ 85% of measured HBM roofline,
    # ~36 MiB VMEM at H=4096 with the explicit limit below.
    TB = _round_up(min(block_b, B), 8)
    Bp = _round_up(B, TB)
    if Bp != B:
        pad = ((0, Bp - B), (0, 0))
        mask = jnp.pad(mask, pad)
        history_rep = jnp.pad(history_rep, pad)
        current_rep = jnp.pad(current_rep, pad)

    if vmem_limit_bytes is None:
        vmem_limit_bytes = _vmem_limit_bytes(
            TB, H, history_rep.dtype.itemsize, prepared["wf_hist"].dtype.itemsize)

    def row_spec(shape):
        return pl.BlockSpec(shape, lambda i: (i, 0))

    def const_spec(shape, single_buffer):
        index_map = lambda i: (0, 0)
        if single_buffer and hasattr(pl, "Buffered"):
            try:
                # Weights never change across grid steps; single-buffering reclaims
                # the second pipeline buffer (~2 MiB bf16 at H=4096).
                return pl.BlockSpec(shape, index_map, pipeline_mode=pl.Buffered(1))
            except TypeError:
                pass
        return pl.BlockSpec(shape, index_map)

    def run(single_buffer):
        return pl.pallas_call(
            functools.partial(_multitask_kernel, attn_col=attn_col),
            out_shape=jax.ShapeDtypeStruct((Bp, HEAD_LANES), jnp.float32),
            grid=(Bp // TB,),
            in_specs=[
                row_spec((TB, 1)),                                  # mask
                row_spec((TB, H)),                                  # history_rep
                row_spec((TB, H)),                                  # current_rep
                const_spec((H, FUSED_LANES), single_buffer),        # wf_hist
                const_spec((H, FUSED_LANES), single_buffer),        # wf_cur
                const_spec((1, ATTN_LANES), single_buffer),         # b1
                const_spec((ATTN_LANES, 1), single_buffer),         # w2d
                const_spec((1, 1), single_buffer),                  # b2d
                const_spec((1, HEAD_LANES), single_buffer),         # fused head bias
            ],
            out_specs=row_spec((TB, HEAD_LANES)),
            compiler_params=pltpu.CompilerParams(
                dimension_semantics=("parallel",),   # shard batch tiles across TCs
                vmem_limit_bytes=vmem_limit_bytes),
        )(mask, history_rep, current_rep,
          prepared["wf_hist"], prepared["wf_cur"], prepared["b1"],
          prepared["w2d"], prepared["b2d"], prepared["b_heads"])

    if single_buffer_weights:
        try:
            out = run(True)
        except Exception:   # pipeline_mode unsupported on this JAX/Mosaic version
            out = run(False)
    else:
        out = run(False)

    sentiment_logits = out[:B, 0:n_sent]
    response_logits = out[:B, n_sent:n_sent + n_resp]
    crisis_logits = out[:B, n_sent + n_resp:attn_col]
    attention_weights = out[:B, attn_col:attn_col + 2]
    return sentiment_logits, response_logits, crisis_logits, attention_weights


def init_params(key, hidden_size, attn_hidden=64,
                n_sentiment=3, n_response=2, n_crisis=2):
    """Deterministic synthetic parameters.  Weights are (in, out) (transposed
    relative to torch.nn.Linear's (out, in))."""
    ks = jax.random.split(key, 10)
    s = 0.02
    return {
        "w1": s * jax.random.normal(ks[0], (2 * hidden_size, attn_hidden), jnp.float32),
        "b1": s * jax.random.normal(ks[1], (1, attn_hidden), jnp.float32),
        "w2": s * jax.random.normal(ks[2], (attn_hidden, 2), jnp.float32),
        "b2": s * jax.random.normal(ks[3], (1, 2), jnp.float32),
        "ws": s * jax.random.normal(ks[4], (hidden_size, n_sentiment), jnp.float32),
        "bs": s * jax.random.normal(ks[5], (1, n_sentiment), jnp.float32),
        "wr": s * jax.random.normal(ks[6], (hidden_size, n_response), jnp.float32),
        "br": s * jax.random.normal(ks[7], (1, n_response), jnp.float32),
        "wc": s * jax.random.normal(ks[8], (hidden_size, n_crisis), jnp.float32),
        "bc": s * jax.random.normal(ks[9], (1, n_crisis), jnp.float32),
    }


def _reference(mask, hist, cur, p):
    """Pure-JAX f32 reference mirroring the PyTorch forward (eval mode)."""
    hist = jnp.where(mask > 0.5, hist, cur)
    concat = jnp.concatenate([hist, cur], axis=1)
    h = jnp.tanh(concat @ p["w1"] + p["b1"])
    scores = h @ p["w2"] + p["b2"]
    attn = jax.nn.softmax(scores, axis=1)
    combined = hist * attn[:, 0:1] + cur * attn[:, 1:2]
    return (combined @ p["ws"] + p["bs"],
            combined @ p["wr"] + p["br"],
            combined @ p["wc"] + p["bc"],
            attn)


if __name__ == "__main__":
    B = 16         # batch of conversations (2 grid steps with block_b=8)
    H = 128        # hidden_size (small stand-in for 4096)
    A = 64         # attention hidden width

    key = jax.random.PRNGKey(0)
    k_hist, k_cur, k_params = jax.random.split(key, 3)

    hist_f32 = jax.random.normal(k_hist, (B, H), jnp.float32)
    cur_f32 = jax.random.normal(k_cur, (B, H), jnp.float32)
    # Round-trip through bf16 so the kernel (bf16 storage) and the f32 reference
    # operate on identical values; remaining diff is MXU bf16 rounding only.
    hist_bf16 = hist_f32.astype(jnp.bfloat16)
    cur_bf16 = cur_f32.astype(jnp.bfloat16)
    hist_f32 = hist_bf16.astype(jnp.float32)
    cur_f32 = cur_bf16.astype(jnp.float32)

    # examples 0, 5, 11 have no history -> fall back to current embedding
    has_history = (jnp.ones((B, 1), jnp.float32)
                   .at[0, 0].set(0.0).at[5, 0].set(0.0).at[11, 0].set(0.0))

    params = init_params(k_params, H, attn_hidden=A)
    for name in ("w1", "ws", "wr", "wc"):   # mirror bf16 storage in the reference
        params[name] = params[name].astype(jnp.bfloat16).astype(jnp.float32)

    prepared = prepare_params(params, weight_dtype=jnp.bfloat16)

    outs = multitask_classifier_forward(has_history, hist_bf16, cur_bf16,
                                        prepared, block_b=8)
    outs = jax.block_until_ready(outs)

    refs = _reference(has_history, hist_f32, cur_f32, params)
    names = ("sentiment", "response_needed", "crisis", "attention")
    for name, o, r in zip(names, outs, refs):
        assert o.shape == r.shape, (name, o.shape, r.shape)
        assert jnp.allclose(o, r, atol=1e-2, rtol=1e-2), (name, o, r)

    print("KERNEL_OK")
</pallas_src>

<mosaic_0001>
module attributes {stable_mosaic.version = 11 : i64} {
  func.func @_multitask_kernel(%arg0: i32, %arg1: memref<8x1xf32, #tpu.memory_space<vmem>>, %arg2: memref<8x128xbf16, #tpu.memory_space<vmem>>, %arg3: memref<8x128xbf16, #tpu.memory_space<vmem>>, %arg4: memref<128x256xbf16, #tpu.memory_space<vmem>>, %arg5: memref<128x256xbf16, #tpu.memory_space<vmem>>, %arg6: memref<1x128xf32, #tpu.memory_space<vmem>>, %arg7: memref<128x1xf32, #tpu.memory_space<vmem>>, %arg8: memref<1x1xf32, #tpu.memory_space<vmem>>, %arg9: memref<1x128xf32, #tpu.memory_space<vmem>>, %arg10: memref<8x128xf32, #tpu.memory_space<vmem>>) attributes {dimension_semantics = [#tpu.dimension_semantics<parallel>], iteration_bounds = array<i64: 2>, scalar_prefetch = 0 : i64, scratch_operands = 0 : i64, tpu.core_type = #tpu.core_type<tc>, window_params = [{transform_indices = @transform_0, window_bounds = array<i64: 8, 1>}, {transform_indices = @transform_1, window_bounds = array<i64: 8, 128>}, {transform_indices = @transform_2, window_bounds = array<i64: 8, 128>}, {pipeline_mode = #tpu.pipeline_mode<synchronous>, transform_indices = @transform_3, window_bounds = array<i64: 128, 256>}, {pipeline_mode = #tpu.pipeline_mode<synchronous>, transform_indices = @transform_4, window_bounds = array<i64: 128, 256>}, {pipeline_mode = #tpu.pipeline_mode<synchronous>, transform_indices = @transform_5, window_bounds = array<i64: 1, 128>}, {pipeline_mode = #tpu.pipeline_mode<synchronous>, transform_indices = @transform_6, window_bounds = array<i64: 128, 1>}, {pipeline_mode = #tpu.pipeline_mode<synchronous>, transform_indices = @transform_7, window_bounds = array<i64: 1, 1>}, {pipeline_mode = #tpu.pipeline_mode<synchronous>, transform_indices = @transform_8, window_bounds = array<i64: 1, 128>}, {transform_indices = @transform_9, window_bounds = array<i64: 8, 128>}]} {
    %c0 = arith.constant 0 : index
    %c0_0 = arith.constant 0 : index
    %0 = vector.load %arg3[%c0, %c0_0] : memref<8x128xbf16, #tpu.memory_space<vmem>>, vector<8x128xbf16>
    %c0_1 = arith.constant 0 : index
    %c0_2 = arith.constant 0 : index
    %1 = vector.load %arg1[%c0_1, %c0_2] : memref<8x1xf32, #tpu.memory_space<vmem>>, vector<8x1xf32>
    %cst = arith.constant 5.000000e-01 : f32
    %2 = vector.broadcast %cst : f32 to vector<8x1xf32>
    %3 = arith.cmpf ogt, %1, %2 : vector<8x1xf32>
    %c0_3 = arith.constant 0 : index
    %c0_4 = arith.constant 0 : index
    %4 = vector.load %arg2[%c0_3, %c0_4] : memref<8x128xbf16, #tpu.memory_space<vmem>>, vector<8x128xbf16>
    %5 = vector.shape_cast %3 : vector<8x1xi1> to vector<8x1xi1>
    %6 = vector.broadcast %5 : vector<8x1xi1> to vector<8x128xi1>
    %7 = arith.select %6, %4, %0 : vector<8x128xi1>, vector<8x128xbf16>
    %c0_5 = arith.constant 0 : index
    %c0_6 = arith.constant 0 : index
    %8 = vector.load %arg4[%c0_5, %c0_6] : memref<128x256xbf16, #tpu.memory_space<vmem>>, vector<128x256xbf16>
    %cst_7 = arith.constant dense<0.000000e+00> : vector<8x256xf32>
    %9 = tpu.matmul %7, %8, %cst_7 {dimension_numbers = #tpu.dot_dimension_numbers<[1], [0], [0], [1], [0, 0, 1, 1], [], []>} : vector<8x128xbf16>, vector<128x256xbf16>, vector<8x256xf32> -> vector<8x256xf32>
    %c0_8 = arith.constant 0 : index
    %c0_9 = arith.constant 0 : index
    %10 = vector.load %arg5[%c0_8, %c0_9] : memref<128x256xbf16, #tpu.memory_space<vmem>>, vector<128x256xbf16>
    %cst_10 = arith.constant dense<0.000000e+00> : vector<8x256xf32>
    %11 = tpu.matmul %0, %10, %cst_10 {dimension_numbers = #tpu.dot_dimension_numbers<[1], [0], [0], [1], [0, 0, 1, 1], [], []>} : vector<8x128xbf16>, vector<128x256xbf16>, vector<8x256xf32> -> vector<8x256xf32>
    %12 = vector.extract_strided_slice %9 {offsets = [0, 0], sizes = [8, 128], strides = [1, 1]} : vector<8x256xf32> to vector<8x128xf32>
    %13 = vector.extract_strided_slice %11 {offsets = [0, 0], sizes = [8, 128], strides = [1, 1]} : vector<8x256xf32> to vector<8x128xf32>
    %14 = arith.addf %12, %13 : vector<8x128xf32>
    %c0_11 = arith.constant 0 : index
    %c0_12 = arith.constant 0 : index
    %15 = vector.load %arg6[%c0_11, %c0_12] : memref<1x128xf32, #tpu.memory_space<vmem>>, vector<1x128xf32>
    %16 = vector.broadcast %15 : vector<1x128xf32> to vector<8x128xf32>
    %17 = arith.addf %14, %16 : vector<8x128xf32>
    %18 = math.tanh %17 : vector<8x128xf32>
    %c0_13 = arith.constant 0 : index
    %c0_14 = arith.constant 0 : index
    %19 = vector.load %arg7[%c0_13, %c0_14] : memref<128x1xf32, #tpu.memory_space<vmem>>, vector<128x1xf32>
    %cst_15 = arith.constant dense<0.000000e+00> : vector<8x1xf32>
    %20 = tpu.matmul %18, %19, %cst_15 {dimension_numbers = #tpu.dot_dimension_numbers<[1], [0], [0], [1], [0, 0, 1, 1], [], []>} : vector<8x128xf32>, vector<128x1xf32>, vector<8x1xf32> -> vector<8x1xf32>
    %c0_16 = arith.constant 0 : index
    %c0_17 = arith.constant 0 : index
    %21 = vector.load %arg8[%c0_16, %c0_17] : memref<1x1xf32, #tpu.memory_space<vmem>>, vector<1x1xf32>
    %22 = vector.broadcast %21 : vector<1x1xf32> to vector<8x1xf32>
    %23 = arith.addf %20, %22 : vector<8x1xf32>
    %24 = math.exp %23 : vector<8x1xf32>
    %cst_18 = arith.constant 1.000000e+00 : f32
    %25 = vector.broadcast %cst_18 : f32 to vector<8x1xf32>
    %26 = arith.addf %25, %24 : vector<8x1xf32>
    %cst_19 = arith.constant 1.000000e+00 : f32
    %27 = vector.broadcast %cst_19 : f32 to vector<8x1xf32>
    %28 = arith.divf %27, %26 : vector<8x1xf32>
    %cst_20 = arith.constant 1.000000e+00 : f32
    %29 = vector.broadcast %cst_20 : f32 to vector<8x1xf32>
    %30 = arith.subf %29, %28 : vector<8x1xf32>
    %31 = vector.extract_strided_slice %9 {offsets = [0, 128], sizes = [8, 128], strides = [1, 1]} : vector<8x256xf32> to vector<8x128xf32>
    %32 = vector.broadcast %28 : vector<8x1xf32> to vector<8x128xf32>
    %33 = arith.mulf %32, %31 : vector<8x128xf32>
    %34 = vector.extract_strided_slice %11 {offsets = [0, 128], sizes = [8, 128], strides = [1, 1]} : vector<8x256xf32> to vector<8x128xf32>
    %35 = vector.broadcast %30 : vector<8x1xf32> to vector<8x128xf32>
    %36 = arith.mulf %35, %34 : vector<8x128xf32>
    %37 = arith.addf %33, %36 : vector<8x128xf32>
    %c0_21 = arith.constant 0 : index
    %c0_22 = arith.constant 0 : index
    %38 = vector.load %arg9[%c0_21, %c0_22] : memref<1x128xf32, #tpu.memory_space<vmem>>, vector<1x128xf32>
    %39 = vector.broadcast %38 : vector<1x128xf32> to vector<8x128xf32>
    %40 = arith.addf %37, %39 : vector<8x128xf32>
    %41 = tpu.iota {dimensions = array<i32: 1>} : vector<8x128xi32>
    %c7_i32 = arith.constant 7 : i32
    %42 = vector.broadcast %c7_i32 : i32 to vector<8x128xi32>
    %43 = arith.cmpi eq, %41, %42 : vector<8x128xi32>
    %c8_i32 = arith.constant 8 : i32
    %44 = vector.broadcast %c8_i32 : i32 to vector<8x128xi32>
    %45 = arith.cmpi eq, %41, %44 : vector<8x128xi32>
    %46 = vector.shape_cast %30 : vector<8x1xf32> to vector<8x1xf32>
    %47 = vector.broadcast %46 : vector<8x1xf32> to vector<8x128xf32>
    %48 = arith.select %45, %47, %40 : vector<8x128xi1>, vector<8x128xf32>
    %49 = vector.shape_cast %28 : vector<8x1xf32> to vector<8x1xf32>
    %50 = vector.broadcast %49 : vector<8x1xf32> to vector<8x128xf32>
    %51 = arith.select %43, %50, %48 : vector<8x128xi1>, vector<8x128xf32>
    %c0_23 = arith.constant 0 : index
    %c0_24 = arith.constant 0 : index
    %52 = vector.load %arg10[%c0_23, %c0_24] : memref<8x128xf32, #tpu.memory_space<vmem>>, vector<8x128xf32>
    tpu.vector_store %arg10[%c0_23, %c0_24], %51 {strides = array<i32>} : memref<8x128xf32, #tpu.memory_space<vmem>>, vector<8x128xf32>,
    return
  }
  func.func @transform_0(%arg0: i32) -> (i32, i32) {
    %c0_i32 = arith.constant 0 : i32
    %c0_i32_0 = arith.constant 0 : i32
    return %arg0, %c0_i32 : i32, i32
  }
  func.func @transform_1(%arg0: i32) -> (i32, i32) {
    %c0_i32 = arith.constant 0 : i32
    %c0_i32_0 = arith.constant 0 : i32
    return %arg0, %c0_i32 : i32, i32
  }
  func.func @transform_2(%arg0: i32) -> (i32, i32) {
    %c0_i32 = arith.constant 0 : i32
    %c0_i32_0 = arith.constant 0 : i32
    return %arg0, %c0_i32 : i32, i32
  }
  func.func @transform_3(%arg0: i32) -> (i32, i32) {
    %c0_i32 = arith.constant 0 : i32
    %c0_i32_0 = arith.constant 0 : i32
    %c0_i32_1 = arith.constant 0 : i32
    return %c0_i32, %c0_i32_0 : i32, i32
  }
  func.func @transform_4(%arg0: i32) -> (i32, i32) {
    %c0_i32 = arith.constant 0 : i32
    %c0_i32_0 = arith.constant 0 : i32
    %c0_i32_1 = arith.constant 0 : i32
    return %c0_i32, %c0_i32_0 : i32, i32
  }
  func.func @transform_5(%arg0: i32) -> (i32, i32) {
    %c0_i32 = arith.constant 0 : i32
    %c0_i32_0 = arith.constant 0 : i32
    %c0_i32_1 = arith.constant 0 : i32
    return %c0_i32, %c0_i32_0 : i32, i32
  }
  func.func @transform_6(%arg0: i32) -> (i32, i32) {
    %c0_i32 = arith.constant 0 : i32
    %c0_i32_0 = arith.constant 0 : i32
    %c0_i32_1 = arith.constant 0 : i32
    return %c0_i32, %c0_i32_0 : i32, i32
  }
  func.func @transform_7(%arg0: i32) -> (i32, i32) {
    %c0_i32 = arith.constant 0 : i32
    %c0_i32_0 = arith.constant 0 : i32
    %c0_i32_1 = arith.constant 0 : i32
    return %c0_i32, %c0_i32_0 : i32, i32
  }
  func.func @transform_8(%arg0: i32) -> (i32, i32) {
    %c0_i32 = arith.constant 0 : i32
    %c0_i32_0 = arith.constant 0 : i32
    %c0_i32_1 = arith.constant 0 : i32
    return %c0_i32, %c0_i32_0 : i32, i32
  }
  func.func @transform_9(%arg0: i32) -> (i32, i32) {
    %c0_i32 = arith.constant 0 : i32
    %c0_i32_0 = arith.constant 0 : i32
    return %arg0, %c0_i32 : i32, i32
  }
}

module attributes {stable_mosaic.version = 11 : i64} {
  func.func @_multitask_kernel(%arg0: i32, %arg1: memref<8x1xf32, #tpu.memory_space<vmem>>, %arg2: memref<8x128xbf16, #tpu.memory_space<vmem>>, %arg3: memref<8x128xbf16, #tpu.memory_space<vmem>>, %arg4: memref<128x256xbf16, #tpu.memory_space<vmem>>, %arg5: memref<128x256xbf16, #tpu.memory_space<vmem>>, %arg6: memref<1x128xf32, #tpu.memory_space<vmem>>, %arg7: memref<128x1xf32, #tpu.memory_space<vmem>>, %arg8: memref<1x1xf32, #tpu.memory_space<vmem>>, %arg9: memref<1x128xf32, #tpu.memory_space<vmem>>, %arg10: memref<8x128xf32, #tpu.memory_space<vmem>>) attributes {dimension_semantics = [#tpu.dimension_semantics<parallel>], iteration_bounds = array<i64: 2>, scalar_prefetch = 0 : i64, scratch_operands = 0 : i64, tpu.core_type = #tpu.core_type<tc>, window_params = [{transform_indices = @transform_0, window_bounds = array<i64: 8, 1>}, {transform_indices = @transform_1, window_bounds = array<i64: 8, 128>}, {transform_indices = @transform_2, window_bounds = array<i64: 8, 128>}, {pipeline_mode = #tpu.pipeline_mode<synchronous>, transform_indices = @transform_3, window_bounds = array<i64: 128, 256>}, {pipeline_mode = #tpu.pipeline_mode<synchronous>, transform_indices = @transform_4, window_bounds = array<i64: 128, 256>}, {pipeline_mode = #tpu.pipeline_mode<synchronous>, transform_indices = @transform_5, window_bounds = array<i64: 1, 128>}, {pipeline_mode = #tpu.pipeline_mode<synchronous>, transform_indices = @transform_6, window_bounds = array<i64: 128, 1>}, {pipeline_mode = #tpu.pipeline_mode<synchronous>, transform_indices = @transform_7, window_bounds = array<i64: 1, 1>}, {pipeline_mode = #tpu.pipeline_mode<synchronous>, transform_indices = @transform_8, window_bounds = array<i64: 1, 128>}, {transform_indices = @transform_9, window_bounds = array<i64: 8, 128>}]} {
    %c0 = arith.constant 0 : index
    %c0_0 = arith.constant 0 : index
    %0 = vector.load %arg3[%c0, %c0_0] : memref<8x128xbf16, #tpu.memory_space<vmem>>, vector<8x128xbf16>
    %c0_1 = arith.constant 0 : index
    %c0_2 = arith.constant 0 : index
    %1 = vector.load %arg1[%c0_1, %c0_2] : memref<8x1xf32, #tpu.memory_space<vmem>>, vector<8x1xf32>
    %cst = arith.constant 5.000000e-01 : f32
    %2 = vector.broadcast %cst : f32 to vector<8x1xf32>
    %3 = arith.cmpf ogt, %1, %2 : vector<8x1xf32>
    %c0_3 = arith.constant 0 : index
    %c0_4 = arith.constant 0 : index
    %4 = vector.load %arg2[%c0_3, %c0_4] : memref<8x128xbf16, #tpu.memory_space<vmem>>, vector<8x128xbf16>
    %5 = vector.shape_cast %3 : vector<8x1xi1> to vector<8x1xi1>
    %6 = vector.broadcast %5 : vector<8x1xi1> to vector<8x128xi1>
    %7 = arith.select %6, %4, %0 : vector<8x128xi1>, vector<8x128xbf16>
    %c0_5 = arith.constant 0 : index
    %c0_6 = arith.constant 0 : index
    %8 = vector.load %arg4[%c0_5, %c0_6] : memref<128x256xbf16, #tpu.memory_space<vmem>>, vector<128x256xbf16>
    %cst_7 = arith.constant dense<0.000000e+00> : vector<8x256xf32>
    %9 = tpu.matmul %7, %8, %cst_7 {dimension_numbers = #tpu.dot_dimension_numbers<[1], [0], [0], [1], [0, 0, 1, 1], [], []>} : vector<8x128xbf16>, vector<128x256xbf16>, vector<8x256xf32> -> vector<8x256xf32>
    %c0_8 = arith.constant 0 : index
    %c0_9 = arith.constant 0 : index
    %10 = vector.load %arg5[%c0_8, %c0_9] : memref<128x256xbf16, #tpu.memory_space<vmem>>, vector<128x256xbf16>
    %cst_10 = arith.constant dense<0.000000e+00> : vector<8x256xf32>
    %11 = tpu.matmul %0, %10, %cst_10 {dimension_numbers = #tpu.dot_dimension_numbers<[1], [0], [0], [1], [0, 0, 1, 1], [], []>} : vector<8x128xbf16>, vector<128x256xbf16>, vector<8x256xf32> -> vector<8x256xf32>
    %12 = vector.extract_strided_slice %9 {offsets = [0, 0], sizes = [8, 128], strides = [1, 1]} : vector<8x256xf32> to vector<8x128xf32>
    %13 = vector.extract_strided_slice %11 {offsets = [0, 0], sizes = [8, 128], strides = [1, 1]} : vector<8x256xf32> to vector<8x128xf32>
    %14 = arith.addf %12, %13 : vector<8x128xf32>
    %c0_11 = arith.constant 0 : index
    %c0_12 = arith.constant 0 : index
    %15 = vector.load %arg6[%c0_11, %c0_12] : memref<1x128xf32, #tpu.memory_space<vmem>>, vector<1x128xf32>
    %16 = vector.broadcast %15 : vector<1x128xf32> to vector<8x128xf32>
    %17 = arith.addf %14, %16 : vector<8x128xf32>
    %18 = math.tanh %17 : vector<8x128xf32>
    %c0_13 = arith.constant 0 : index
    %c0_14 = arith.constant 0 : index
    %19 = vector.load %arg7[%c0_13, %c0_14] : memref<128x1xf32, #tpu.memory_space<vmem>>, vector<128x1xf32>
    %cst_15 = arith.constant dense<0.000000e+00> : vector<8x1xf32>
    %20 = tpu.matmul %18, %19, %cst_15 {dimension_numbers = #tpu.dot_dimension_numbers<[1], [0], [0], [1], [0, 0, 1, 1], [], []>} : vector<8x128xf32>, vector<128x1xf32>, vector<8x1xf32> -> vector<8x1xf32>
    %c0_16 = arith.constant 0 : index
    %c0_17 = arith.constant 0 : index
    %21 = vector.load %arg8[%c0_16, %c0_17] : memref<1x1xf32, #tpu.memory_space<vmem>>, vector<1x1xf32>
    %22 = vector.broadcast %21 : vector<1x1xf32> to vector<8x1xf32>
    %23 = arith.addf %20, %22 : vector<8x1xf32>
    %24 = math.exp %23 : vector<8x1xf32>
    %cst_18 = arith.constant 1.000000e+00 : f32
    %25 = vector.broadcast %cst_18 : f32 to vector<8x1xf32>
    %26 = arith.addf %25, %24 : vector<8x1xf32>
    %cst_19 = arith.constant 1.000000e+00 : f32
    %27 = vector.broadcast %cst_19 : f32 to vector<8x1xf32>
    %28 = arith.divf %27, %26 : vector<8x1xf32>
    %cst_20 = arith.constant 1.000000e+00 : f32
    %29 = vector.broadcast %cst_20 : f32 to vector<8x1xf32>
    %30 = arith.subf %29, %28 : vector<8x1xf32>
    %31 = vector.extract_strided_slice %9 {offsets = [0, 128], sizes = [8, 128], strides = [1, 1]} : vector<8x256xf32> to vector<8x128xf32>
    %32 = vector.broadcast %28 : vector<8x1xf32> to vector<8x128xf32>
    %33 = arith.mulf %32, %31 : vector<8x128xf32>
    %34 = vector.extract_strided_slice %11 {offsets = [0, 128], sizes = [8, 128], strides = [1, 1]} : vector<8x256xf32> to vector<8x128xf32>
    %35 = vector.broadcast %30 : vector<8x1xf32> to vector<8x128xf32>
    %36 = arith.mulf %35, %34 : vector<8x128xf32>
    %37 = arith.addf %33, %36 : vector<8x128xf32>
    %c0_21 = arith.constant 0 : index
    %c0_22 = arith.constant 0 : index
    %38 = vector.load %arg9[%c0_21, %c0_22] : memref<1x128xf32, #tpu.memory_space<vmem>>, vector<1x128xf32>
    %39 = vector.broadcast %38 : vector<1x128xf32> to vector<8x128xf32>
    %40 = arith.addf %37, %39 : vector<8x128xf32>
    %41 = tpu.iota {dimensions = array<i32: 1>} : vector<8x128xi32>
    %c7_i32 = arith.constant 7 : i32
    %42 = vector.broadcast %c7_i32 : i32 to vector<8x128xi32>
    %43 = arith.cmpi eq, %41, %42 : vector<8x128xi32>
    %c8_i32 = arith.constant 8 : i32
    %44 = vector.broadcast %c8_i32 : i32 to vector<8x128xi32>
    %45 = arith.cmpi eq, %41, %44 : vector<8x128xi32>
    %46 = vector.shape_cast %30 : vector<8x1xf32> to vector<8x1xf32>
    %47 = vector.broadcast %46 : vector<8x1xf32> to vector<8x128xf32>
    %48 = arith.select %45, %47, %40 : vector<8x128xi1>, vector<8x128xf32>
    %49 = vector.shape_cast %28 : vector<8x1xf32> to vector<8x1xf32>
    %50 = vector.broadcast %49 : vector<8x1xf32> to vector<8x128xf32>
    %51 = arith.select %43, %50, %48 : vector<8x128xi1>, vector<8x128xf32>
    %c0_23 = arith.constant 0 : index
    %c0_24 = arith.constant 0 : index
    %52 = vector.load %arg10[%c0_23, %c0_24] : memref<8x128xf32, #tpu.memory_space<vmem>>, vector<8x128xf32>
    tpu.vector_store %arg10[%c0_23, %c0_24], %51 {strides = array<i32>} : memref<8x128xf32, #tpu.memory_space<vmem>>, vector<8x128xf32>,
    return
  }
  func.func @transform_0(%arg0: i32) -> (i32, i32) {
    %c0_i32 = arith.constant 0 : i32
    %c0_i32_0 = arith.constant 0 : i32
    return %arg0, %c0_i32 : i32, i32
  }
  func.func @transform_1(%arg0: i32) -> (i32, i32) {
    %c0_i32 = arith.constant 0 : i32
    %c0_i32_0 = arith.constant 0 : i32
    return %arg0, %c0_i32 : i32, i32
  }
  func.func @transform_2(%arg0: i32) -> (i32, i32) {
    %c0_i32 = arith.constant 0 : i32
    %c0_i32_0 = arith.constant 0 : i32
    return %arg0, %c0_i32 : i32, i32
  }
  func.func @transform_3(%arg0: i32) -> (i32, i32) {
    %c0_i32 = arith.constant 0 : i32
    %c0_i32_0 = arith.constant 0 : i32
    %c0_i32_1 = arith.constant 0 : i32
    return %c0_i32, %c0_i32_0 : i32, i32
  }
  func.func @transform_4(%arg0: i32) -> (i32, i32) {
    %c0_i32 = arith.constant 0 : i32
    %c0_i32_0 = arith.constant 0 : i32
    %c0_i32_1 = arith.constant 0 : i32
    return %c0_i32, %c0_i32_0 : i32, i32
  }
  func.func @transform_5(%arg0: i32) -> (i32, i32) {
    %c0_i32 = arith.constant 0 : i32
    %c0_i32_0 = arith.constant 0 : i32
    %c0_i32_1 = arith.constant 0 : i32
    return %c0_i32, %c0_i32_0 : i32, i32
  }
  func.func @transform_6(%arg0: i32) -> (i32, i32) {
    %c0_i32 = arith.constant 0 : i32
    %c0_i32_0 = arith.constant 0 : i32
    %c0_i32_1 = arith.constant 0 : i32
    return %c0_i32, %c0_i32_0 : i32, i32
  }
  func.func @transform_7(%arg0: i32) -> (i32, i32) {
    %c0_i32 = arith.constant 0 : i32
    %c0_i32_0 = arith.constant 0 : i32
    %c0_i32_1 = arith.constant 0 : i32
    return %c0_i32, %c0_i32_0 : i32, i32
  }
  func.func @transform_8(%arg0: i32) -> (i32, i32) {
    %c0_i32 = arith.constant 0 : i32
    %c0_i32_0 = arith.constant 0 : i32
    %c0_i32_1 = arith.constant 0 : i32
    return %c0_i32, %c0_i32_0 : i32, i32
  }
  func.func @transform_9(%arg0: i32) -> (i32, i32) {
    %c0_i32 = arith.constant 0 : i32
    %c0_i32_0 = arith.constant 0 : i32
    return %arg0, %c0_i32 : i32, i32
  }
}

</mosaic_0001>

<llo_original>
// kernel: tpu_custom_call.1
$region0: #{tpu_custom_call.1}
  #allocation0 [shape = 'u32[]', space=smem, size = 0x4, offset = 0x4, fixed_abs, tag = 'smem constant byte address 0x4 - core index']
  #allocation1 [shape = 'u32[72,128]{1,0:T(1,128)}', space=vmem, size = 0x9000, scoped, tag = 'internal scratch']
  #allocation2 [shape = 'f32[1,1]{1,0:T(1,128)S(1)}', space=vmem, size = 0x200, scoped, tag = 'scoped memory for tpu_custom_call.1']
  %s0 = inlined_call_operand.vmem [shape: f32[16,1], index: 0, kind: input, shape index: {}]
  %s1 = inlined_call_operand.vmem [shape: bf16[16,128], index: 1, kind: input, shape index: {}]
  %s2 = inlined_call_operand.vmem [shape: bf16[16,128], index: 2, kind: input, shape index: {}]
  %s3 = inlined_call_operand.vmem [shape: bf16[128,256], index: 3, kind: input, shape index: {}]
  %s4 = inlined_call_operand.hbm [shape: bf16[128,256], index: 4, kind: input, shape index: {}]
  %s5 = inlined_call_operand.vmem [shape: f32[1,128], index: 5, kind: input, shape index: {}]
  %s6 = inlined_call_operand.vmem [shape: f32[128,1], index: 6, kind: input, shape index: {}]
  %s7 = inlined_call_operand.<no memory space> [shape: f32[1,1], index: 7, kind: input, shape index: {}]
  %s8 = inlined_call_operand.vmem [shape: f32[1,128], index: 8, kind: input, shape index: {}]
  %s9 = inlined_call_operand.hbm [shape: f32[16,128], index: 9, kind: output, shape index: {}]
  %s10 = sld [smem:[#allocation0]]
  $region73: #{tpu_custom_call.1} parent=0
    _
  %s12 = ssub.s32 1, %s10
  %s13 = scalar_select 0, %s12, %s10
  %v14 = vstv %s7
  %15 = vst [vmem:[#allocation2] sm:$0x1] %v14
  $region1: #{tpu_custom_call.1} parent=0
    #allocation3 [shape = 'u8[65536]{0}', space=vmem, size = 0x10000, scoped, tag = 'input window, operand 4, single buffered']
    #allocation4 [shape = 's32[2]{0}', space=sflag, size = 0x8, scoped, tag = 'scoped memory for tpu_custom_call.1']
    #allocation5 [shape = 's32[2]{0}', space=sflag, size = 0x8, scoped, tag = 'scoped memory for tpu_custom_call.1']
    #allocation6 [shape = 'u8[8192]{0}', space=vmem, size = 0x2000, scoped, tag = 'output window, operand 0']
    %16 = vsyncpa [#allocation4], 0
    %17 = vsyncpa [#allocation5], 0
    %s18 = scalar_lea.sflag [#allocation5], 1
    %19 = vsyncpa %s18, 0
    loop: start=0, step=1, limit=4
    $region2: #{tpu_custom_call.1} parent=1 // loop_pre_header
      _
    $region3: #{tpu_custom_call.1} parent=1 // loop_header
      %s21 = sphi 0, %s25
      %p22 = scmp.ge.s32.totalorder %s21, 4
      %s31 = sphi 0, %s33
      %s34 = sphi 0, %s31
      %s35 = sphi 0, %s34
      %s51 = sphi 0, %s35
      %s57 = sphi 0, %s59
      %s60 = sphi 0, %s57
      %s61 = sphi 0, %s60
      %s77 = sphi 0, %s61
      %s83 = sphi 0, %s85
      %s86 = sphi 0, %s83
      %s87 = sphi 0, %s86
      %s103 = sphi 0, %s87
      %s107 = sphi 0, %s107
      %s109 = sphi 0, %s107
      %s110 = sphi 0, %s109
      %s124 = sphi 0, %s110
      %s128 = sphi 0, %s128
      %s130 = sphi 0, %s128
      %s131 = sphi 0, %s130
      %s145 = sphi 0, %s131
      %s149 = sphi 0, %s149
      %s151 = sphi 0, %s149
      %s152 = sphi 0, %s151
      %s166 = sphi 0, %s152
      %s170 = sphi 0, %s170
      %s172 = sphi 0, %s170
      %s173 = sphi 0, %s172
      %s187 = sphi 0, %s173
      %s191 = sphi 0, %s191
      %s193 = sphi 0, %s191
      %s194 = sphi 0, %s193
      %s208 = sphi 0, %s194
      %s212 = sphi 0, %s212
      %s214 = sphi 0, %s212
      %s215 = sphi 0, %s214
      %s229 = sphi 0, %s215
      %s235 = sphi 0, %s237
      %s238 = sphi 0, %s235
      %s239 = sphi 0, %s238
      %s255 = sphi 0, %s239
    $region4: #{tpu_custom_call.1} parent=1 // loop_header_branch
      %24 = sbr.rel (%p22) target = $region8
    $region5: #{tpu_custom_call.1} parent=1 // loop_body
      %s26 = ssub.s32 %s21, 1
      %s27 = ssub.s32 %s21, 2
      %s28 = sadd.s32 %s21, 1
      %s29 = ssub.s32 %s21, %s28
      %p30 = scmp.eq.s32.totalorder %s29, 0
      %s32 = sadd.s32 %s31, 1
      %s33 = scalar_select %p30, %s31, %s32
      %p36 = pneg %p30
      %p37 = scmp.eq.s32.totalorder %s21, 1
      %p38 = por %p36, %p37
      %p39 = scmp.ne.s32.totalorder %s31, %s34
      %p40 = scmp.eq.s32.totalorder %s21, 0
      %p41 = por %p39, %p40
      %p42 = scmp.ne.s32.totalorder %s31, %s34
      %p43 = scmp.eq.s32.totalorder %s26, 1
      %p44 = por %p42, %p43
      %p45 = scmp.ne.s32.totalorder %s34, %s35
      %p46 = scmp.eq.s32.totalorder %s26, 0
      %p47 = por %p45, %p46
      %p48 = scmp.ne.s32.totalorder %s34, %s35
      %p49 = scmp.eq.s32.totalorder %s27, 1
      %p50 = por %p48, %p49
      %p52 = scmp.ne.s32.totalorder %s35, %s51
      %p53 = scmp.eq.s32.totalorder %s27, 0
      %p54 = por %p52, %p53
      %s55 = ssub.s32 %s21, %s28
      %p56 = scmp.eq.s32.totalorder %s55, 0
      %s58 = sadd.s32 %s57, 1
      %s59 = scalar_select %p56, %s57, %s58
      %p62 = pneg %p56
      %p63 = scmp.eq.s32.totalorder %s21, 1
      %p64 = por %p62, %p63
      %p65 = scmp.ne.s32.totalorder %s57, %s60
      %p66 = scmp.eq.s32.totalorder %s21, 0
      %p67 = por %p65, %p66
      %p68 = scmp.ne.s32.totalorder %s57, %s60
      %p69 = scmp.eq.s32.totalorder %s26, 1
      %p70 = por %p68, %p69
      %p71 = scmp.ne.s32.totalorder %s60, %s61
      %p72 = scmp.eq.s32.totalorder %s26, 0
      %p73 = por %p71, %p72
      %p74 = scmp.ne.s32.totalorder %s60, %s61
      %p75 = scmp.eq.s32.totalorder %s27, 1
      %p76 = por %p74, %p75
      %p78 = scmp.ne.s32.totalorder %s61, %s77
      %p79 = scmp.eq.s32.totalorder %s27, 0
      %p80 = por %p78, %p79
      %s81 = ssub.s32 %s21, %s28
      %p82 = scmp.eq.s32.totalorder %s81, 0
      %s84 = sadd.s32 %s83, 1
      %s85 = scalar_select %p82, %s83, %s84
      %p88 = pneg %p82
      %p89 = scmp.eq.s32.totalorder %s21, 1
      %p90 = por %p88, %p89
      %p91 = scmp.ne.s32.totalorder %s83, %s86
      %p92 = scmp.eq.s32.totalorder %s21, 0
      %p93 = por %p91, %p92
      %p94 = scmp.ne.s32.totalorder %s83, %s86
      %p95 = scmp.eq.s32.totalorder %s26, 1
      %p96 = por %p94, %p95
      %p97 = scmp.ne.s32.totalorder %s86, %s87
      %p98 = scmp.eq.s32.totalorder %s26, 0
      %p99 = por %p97, %p98
      %p100 = scmp.ne.s32.totalorder %s86, %s87
      %p101 = scmp.eq.s32.totalorder %s27, 1
      %p102 = por %p100, %p101
      %p104 = scmp.ne.s32.totalorder %s87, %s103
      %p105 = scmp.eq.s32.totalorder %s27, 0
      %p106 = por %p104, %p105
      %s108 = sadd.s32 %s107, 1
      %p111 = scmp.eq.s32.totalorder %s21, 1
      %p112 = scmp.ne.s32.totalorder %s107, %s109
      %p113 = scmp.eq.s32.totalorder %s21, 0
      %p114 = por %p112, %p113
      %p115 = scmp.ne.s32.totalorder %s107, %s109
      %p116 = scmp.eq.s32.totalorder %s26, 1
      %p117 = por %p115, %p116
      %p118 = scmp.ne.s32.totalorder %s109, %s110
      %p119 = scmp.eq.s32.totalorder %s26, 0
      %p120 = por %p118, %p119
      %p121 = scmp.ne.s32.totalorder %s109, %s110
      %p122 = scmp.eq.s32.totalorder %s27, 1
      %p123 = por %p121, %p122
      %p125 = scmp.ne.s32.totalorder %s110, %s124
      %p126 = scmp.eq.s32.totalorder %s27, 0
      %p127 = por %p125, %p126
      %s129 = sadd.s32 %s128, 1
      %p132 = scmp.eq.s32.totalorder %s21, 1
      %p133 = scmp.ne.s32.totalorder %s128, %s130
      %p134 = scmp.eq.s32.totalorder %s21, 0
      %p135 = por %p133, %p134
      %p136 = scmp.ne.s32.totalorder %s128, %s130
      %p137 = scmp.eq.s32.totalorder %s26, 1
      %p138 = por %p136, %p137
      %p139 = scmp.ne.s32.totalorder %s130, %s131
      %p140 = scmp.eq.s32.totalorder %s26, 0
      %p141 = por %p139, %p140
      %p142 = scmp.ne.s32.totalorder %s130, %s131
      %p143 = scmp.eq.s32.totalorder %s27, 1
      %p144 = por %p142, %p143
      %p146 = scmp.ne.s32.totalorder %s131, %s145
      %p147 = scmp.eq.s32.totalorder %s27, 0
      %p148 = por %p146, %p147
      %s150 = sadd.s32 %s149, 1
      %p153 = scmp.eq.s32.totalorder %s21, 1
      %p154 = scmp.ne.s32.totalorder %s149, %s151
      %p155 = scmp.eq.s32.totalorder %s21, 0
      %p156 = por %p154, %p155
      %p157 = scmp.ne.s32.totalorder %s149, %s151
      %p158 = scmp.eq.s32.totalorder %s26, 1
      %p159 = por %p157, %p158
      %p160 = scmp.ne.s32.totalorder %s151, %s152
      %p161 = scmp.eq.s32.totalorder %s26, 0
      %p162 = por %p160, %p161
      %p163 = scmp.ne.s32.totalorder %s151, %s152
      %p164 = scmp.eq.s32.totalorder %s27, 1
      %p165 = por %p163, %p164
      %p167 = scmp.ne.s32.totalorder %s152, %s166
      %p168 = scmp.eq.s32.totalorder %s27, 0
      %p169 = por %p167, %p168
      %s171 = sadd.s32 %s170, 1
      %p174 = scmp.eq.s32.totalorder %s21, 1
      %p175 = scmp.ne.s32.totalorder %s170, %s172
      %p176 = scmp.eq.s32.totalorder %s21, 0
      %p177 = por %p175, %p176
      %p178 = scmp.ne.s32.totalorder %s170, %s172
      %p179 = scmp.eq.s32.totalorder %s26, 1
      %p180 = por %p178, %p179
      %p181 = scmp.ne.s32.totalorder %s172, %s173
      %p182 = scmp.eq.s32.totalorder %s26, 0
      %p183 = por %p181, %p182
      %p184 = scmp.ne.s32.totalorder %s172, %s173
      %p185 = scmp.eq.s32.totalorder %s27, 1
      %p186 = por %p184, %p185
      %p188 = scmp.ne.s32.totalorder %s173, %s187
      %p189 = scmp.eq.s32.totalorder %s27, 0
      %p190 = por %p188, %p189
      %s192 = sadd.s32 %s191, 1
      %p195 = scmp.eq.s32.totalorder %s21, 1
      %p196 = scmp.ne.s32.totalorder %s191, %s193
      %p197 = scmp.eq.s32.totalorder %s21, 0
      %p198 = por %p196, %p197
      %p199 = scmp.ne.s32.totalorder %s191, %s193
      %p200 = scmp.eq.s32.totalorder %s26, 1
      %p201 = por %p199, %p200
      %p202 = scmp.ne.s32.totalorder %s193, %s194
      %p203 = scmp.eq.s32.totalorder %s26, 0
      %p204 = por %p202, %p203
      %p205 = scmp.ne.s32.totalorder %s193, %s194
      %p206 = scmp.eq.s32.totalorder %s27, 1
      %p207 = por %p205, %p206
      %p209 = scmp.ne.s32.totalorder %s194, %s208
      %p210 = scmp.eq.s32.totalorder %s27, 0
      %p211 = por %p209, %p210
      %s213 = sadd.s32 %s212, 1
      %p216 = scmp.eq.s32.totalorder %s21, 1
      %p217 = scmp.ne.s32.totalorder %s212, %s214
      %p218 = scmp.eq.s32.totalorder %s21, 0
      %p219 = por %p217, %p218
      %p220 = scmp.ne.s32.totalorder %s212, %s214
      %p221 = scmp.eq.s32.totalorder %s26, 1
      %p222 = por %p220, %p221
      %p223 = scmp.ne.s32.totalorder %s214, %s215
      %p224 = scmp.eq.s32.totalorder %s26, 0
      %p225 = por %p223, %p224
      %p226 = scmp.ne.s32.totalorder %s214, %s215
      %p227 = scmp.eq.s32.totalorder %s27, 1
      %p228 = por %p226, %p227
      %p230 = scmp.ne.s32.totalorder %s215, %s229
      %p231 = scmp.eq.s32.totalorder %s27, 0
      %p232 = por %p230, %p231
      %s233 = ssub.s32 %s21, %s28
      %p234 = scmp.eq.s32.totalorder %s233, 0
      %s236 = sadd.s32 %s235, 1
      %s237 = scalar_select %p234, %s235, %s236
      %p240 = pneg %p234
      %p241 = scmp.eq.s32.totalorder %s21, 1
      %p242 = por %p240, %p241
      %p243 = scmp.ne.s32.totalorder %s235, %s238
      %p244 = scmp.eq.s32.totalorder %s21, 0
      %p245 = por %p243, %p244
      %p246 = scmp.ne.s32.totalorder %s235, %s238
      %p247 = scmp.eq.s32.totalorder %s26, 1
      %p248 = por %p246, %p247
      %p249 = scmp.ne.s32.totalorder %s238, %s239
      %p250 = scmp.eq.s32.totalorder %s26, 0
      %p251 = por %p249, %p250
      %p252 = scmp.ne.s32.totalorder %s238, %s239
      %p253 = scmp.eq.s32.totalorder %s27, 1
      %p254 = por %p252, %p253
      %p256 = scmp.ne.s32.totalorder %s239, %s255
      %p257 = scmp.eq.s32.totalorder %s27, 0
      %p258 = por %p256, %p257
      %p259 = scmp.le.s32.totalorder 1, %s21
      %p260 = scmp.lt.s32.totalorder %s21, 3
      %p261 = pnand %p259, %p260
      %p262 = pneg %p261
      // Predicated region
      $region9: #{tpu_custom_call.1} parent=5 // pred_check
        _
      $region10: #{tpu_custom_call.1} parent=5 // pred_check_branch
        %264 = sbr.rel (%p261) target = $region12
      $region11: #{tpu_custom_call.1} parent=5 // pred_region
        %s265 = ssub.s32 %s21, 1
        // Predicated region
        $region13: #{tpu_custom_call.1} parent=11 // pred_check
          %p266 = pneg %p120
        $region14: #{tpu_custom_call.1} parent=11 // pred_check_branch
          %268 = sbr.rel (%p266) target = $region16
        $region15: #{tpu_custom_call.1} parent=11 // pred_region
          _
        $region16: #{tpu_custom_call.1} parent=11 // pred_fallthru
          _
        // Predicated region
        $region17: #{tpu_custom_call.1} parent=11 // pred_check
          %p269 = pneg %p141
        $region18: #{tpu_custom_call.1} parent=11 // pred_check_branch
          %271 = sbr.rel (%p269) target = $region20
        $region19: #{tpu_custom_call.1} parent=11 // pred_region
          %273 = vsyncadd [#allocation4], 0
          %s274 = sshll.u32 %s4, 4
          %s275 = int_to_ptr.hbm [resolvable:$true] %s274
          %s276 = sshll.u32 [#allocation3], 4
          %s277 = int_to_ptr.vmem [resolvable:$true] %s276
          %282 = dma.hbm_to_vmem [thread:$0]  %s275, 2048, %s277, [#allocation4], 128, 128, 8
        $region20: #{tpu_custom_call.1} parent=11 // pred_fallthru
          _
        // Predicated region
        $region21: #{tpu_custom_call.1} parent=11 // pred_check
          %p283 = pneg %p162
        $region22: #{tpu_custom_call.1} parent=11 // pred_check_branch
          %285 = sbr.rel (%p283) target = $region24
        $region23: #{tpu_custom_call.1} parent=11 // pred_region
          _
        $region24: #{tpu_custom_call.1} parent=11 // pred_fallthru
          _
        // Predicated region
        $region25: #{tpu_custom_call.1} parent=11 // pred_check
          %p286 = pneg %p183
        $region26: #{tpu_custom_call.1} parent=11 // pred_check_branch
          %288 = sbr.rel (%p286) target = $region28
        $region27: #{tpu_custom_call.1} parent=11 // pred_region
          _
        $region28: #{tpu_custom_call.1} parent=11 // pred_fallthru
          _
        // Predicated region
        $region29: #{tpu_custom_call.1} parent=11 // pred_check
          %p289 = pneg %p204
        $region30: #{tpu_custom_call.1} parent=11 // pred_check_branch
          %291 = sbr.rel (%p289) target = $region32
        $region31: #{tpu_custom_call.1} parent=11 // pred_region
          _
        $region32: #{tpu_custom_call.1} parent=11 // pred_fallthru
          _
        // Predicated region
        $region33: #{tpu_custom_call.1} parent=11 // pred_check
          %p292 = pneg %p225
        $region34: #{tpu_custom_call.1} parent=11 // pred_check_branch
          %294 = sbr.rel (%p292) target = $region36
        $region35: #{tpu_custom_call.1} parent=11 // pred_region
          _
        $region36: #{tpu_custom_call.1} parent=11 // pred_fallthru
          _
      $region12: #{tpu_custom_call.1} parent=5 // pred_fallthru
        _
      %p295 = scmp.lt.s32.totalorder %s21, 2
      // Predicated region
      $region37: #{tpu_custom_call.1} parent=5 // pred_check
        %p296 = pneg %p295
      $region38: #{tpu_custom_call.1} parent=5 // pred_check_branch
        %298 = sbr.rel (%p296) target = $region40
      $region39: #{tpu_custom_call.1} parent=5 // pred_region
        // Predicated region
        $region41: #{tpu_custom_call.1} parent=39 // pred_check
          %p299 = pneg %p41
        $region42: #{tpu_custom_call.1} parent=39 // pred_check_branch
          %301 = sbr.rel (%p299) target = $region44
        $region43: #{tpu_custom_call.1} parent=39 // pred_region
          %p302 = scmp.lt.s32.totalorder %s21, 1
          %s303 = scalar_select %p302, %s21, 1
          %s304 = smul.addr %s303, 8
          %s305 = scalar_lea.vmem %s0, %s304
        $region44: #{tpu_custom_call.1} parent=39 // pred_fallthru
          _
        // Predicated region
        $region45: #{tpu_custom_call.1} parent=39 // pred_check
          %p306 = pneg %p67
        $region46: #{tpu_custom_call.1} parent=39 // pred_check_branch
          %308 = sbr.rel (%p306) target = $region48
        $region47: #{tpu_custom_call.1} parent=39 // pred_region
          %p309 = scmp.lt.s32.totalorder %s21, 1
          %s310 = scalar_select %p309, %s21, 1
          %s311 = smul.addr %s310, 4
          %s312 = scalar_lea.vmem %s1, %s311
        $region48: #{tpu_custom_call.1} parent=39 // pred_fallthru
          _
        // Predicated region
        $region49: #{tpu_custom_call.1} parent=39 // pred_check
          %p313 = pneg %p93
        $region50: #{tpu_custom_call.1} parent=39 // pred_check_branch
          %315 = sbr.rel (%p313) target = $region52
        $region51: #{tpu_custom_call.1} parent=39 // pred_region
          %p316 = scmp.lt.s32.totalorder %s21, 1
          %s317 = scalar_select %p316, %s21, 1
          %s318 = smul.addr %s317, 4
          %s319 = scalar_lea.vmem %s2, %s318
        $region52: #{tpu_custom_call.1} parent=39 // pred_fallthru
          _
      $region40: #{tpu_custom_call.1} parent=5 // pred_fallthru
        _
      %p320 = scmp.le.s32.totalorder 1, %s21
      %p321 = scmp.lt.s32.totalorder %s21, 3
      %p322 = pnand %p320, %p321
      %p323 = pneg %p322
      // Predicated region
      $region53: #{tpu_custom_call.1} parent=5 // pred_check
        _
      $region54: #{tpu_custom_call.1} parent=5 // pred_check_branch
        %325 = sbr.rel (%p322) target = $region56
      $region55: #{tpu_custom_call.1} parent=5 // pred_region
        %s326 = ssub.s32 %s21, 1
        // Predicated region
        $region57: #{tpu_custom_call.1} parent=55 // pred_check
          %p327 = pneg %p141
        $region58: #{tpu_custom_call.1} parent=55 // pred_check_branch
          %329 = sbr.rel (%p327) target = $region60
        $region59: #{tpu_custom_call.1} parent=55 // pred_region
          %331 = dma.done [#allocation4], 2048
        $region60: #{tpu_custom_call.1} parent=55 // pred_fallthru
          _
        %p332 = scmp.lt.s32.totalorder %s26, 1
        %s333 = scalar_select %p332, %s26, 1
        %s334 = smul.addr %s333, 8
        %s335 = scalar_lea.vmem %s0, %s334
        %p336 = pneg %p47
        %p337 = pneg %p44
        %p338 = scmp.lt.s32.totalorder %s26, 1
        %s339 = scalar_select %p338, %s26, 1
        %s340 = smul.addr %s339, 4
        %s341 = scalar_lea.vmem %s1, %s340
        %p342 = pneg %p73
        %p343 = pneg %p70
        %p344 = scmp.lt.s32.totalorder %s26, 1
        %s345 = scalar_select %p344, %s26, 1
        %s346 = smul.addr %s345, 4
        %s347 = scalar_lea.vmem %s2, %s346
        %p348 = pneg %p99
        %p349 = pneg %p96
        %p350 = pneg %p120
        %p351 = pneg %p117
        %p352 = pneg %p141
        %p353 = pneg %p138
        %p354 = pneg %p162
        %p355 = pneg %p159
        %p356 = pneg %p183
        %p357 = pneg %p180
        %p358 = pneg %p204
        %p359 = pneg %p201
        %p360 = pneg %p225
        %p361 = pneg %p222
        %p362 = pneg %p251
        %p363 = pneg %p248
        %s364 = sand.u32 %s238, 1
        %s365 = scalar_lea.sflag [#allocation5], %s364
        %s366 = sand.u32 %s238, 1
        %s367 = smul.addr %s366, 8
        %s368 = scalar_lea.vmem [#allocation6], %s367
        %p369 = scmp.lt.s32.totalorder %s26, 1
        %s370 = scalar_select %p369, %s26, 1
        %s371 = smul.addr %s370, 8
        %s372 = scalar_lea.vmem %s0, %s371
        %p373 = scmp.lt.s32.totalorder %s26, 1
        %s374 = scalar_select %p373, %s26, 1
        %s375 = smul.addr %s374, 4
        %s376 = scalar_lea.vmem %s1, %s375
        %p377 = scmp.lt.s32.totalorder %s26, 1
        %s378 = scalar_select %p377, %s26, 1
        %s379 = smul.addr %s378, 4
        %s380 = scalar_lea.vmem %s2, %s379
        %v381 = vld [vmem:[%s380] sm:$0xf]
        %v382 = vld [vmem:[%s372] sm:$0xff]
        %vm383 = vcmp.gt.f32.partialorder %v382, 0.5
        %v384 = vld [vmem:[%s376] sm:$0xf]
        %v385 = vsel %vm383, 1, 0
        %386 = vset.pattern.permute.xlu0 0
        %387 = vperm.xlu0 %386, %v385
        %v388 = vpop.permute.xlu0 %387
        %vm389 = vcmp.eq.s32.totalorder %v388, 1
        %vm390 = vmpackc.low %vm389, %vm389
        %v391 = vsel %vm390, %v384, %v381
        %v392 = vld [vmem:[%s3] sm:$0xff]
        %v393 = vld [vmem:[%s3 + $0x8] sm:$0xff]
        %v394 = vld [vmem:[%s3 + $0x10] sm:$0xff]
        %v395 = vld [vmem:[%s3 + $0x18] sm:$0xff]
        %v396 = vld [vmem:[%s3 + $0x20] sm:$0xff]
        %v397 = vld [vmem:[%s3 + $0x28] sm:$0xff]
        %v398 = vld [vmem:[%s3 + $0x30] sm:$0xff]
        %v399 = vld [vmem:[%s3 + $0x38] sm:$0xff]
        %v400 = vld [vmem:[%s3 + $0x40] sm:$0xff]
        %v401 = vld [vmem:[%s3 + $0x48] sm:$0xff]
        %v402 = vld [vmem:[%s3 + $0x50] sm:$0xff]
        %v403 = vld [vmem:[%s3 + $0x58] sm:$0xff]
        %v404 = vld [vmem:[%s3 + $0x60] sm:$0xff]
        %v405 = vld [vmem:[%s3 + $0x68] sm:$0xff]
        %v406 = vld [vmem:[%s3 + $0x70] sm:$0xff]
        %v407 = vld [vmem:[%s3 + $0x78] sm:$0xff]
        %v424 = vunpack.c.l.b16 %v392
        %v425 = vunpack.c.h.b16 %v392
        %v426 = vunpack.c.l.b16 %v393
        %v427 = vunpack.c.h.b16 %v393
        %v428 = vunpack.c.l.b16 %v394
        %v429 = vunpack.c.h.b16 %v394
        %v430 = vunpack.c.l.b16 %v395
        %v431 = vunpack.c.h.b16 %v395
        %v432 = vunpack.c.l.b16 %v396
        %v433 = vunpack.c.h.b16 %v396
        %v434 = vunpack.c.l.b16 %v397
        %v435 = vunpack.c.h.b16 %v397
        %v436 = vunpack.c.l.b16 %v398
        %v437 = vunpack.c.h.b16 %v398
        %v438 = vunpack.c.l.b16 %v399
        %v439 = vunpack.c.h.b16 %v399
        %v440 = vunpack.c.l.b16 %v400
        %v441 = vunpack.c.h.b16 %v400
        %v442 = vunpack.c.l.b16 %v401
        %v443 = vunpack.c.h.b16 %v401
        %v444 = vunpack.c.l.b16 %v402
        %v445 = vunpack.c.h.b16 %v402
        %v446 = vunpack.c.l.b16 %v403
        %v447 = vunpack.c.h.b16 %v403
        %v448 = vunpack.c.l.b16 %v404
        %v449 = vunpack.c.h.b16 %v404
        %v450 = vunpack.c.l.b16 %v405
        %v451 = vunpack.c.h.b16 %v405
        %v452 = vunpack.c.l.b16 %v406
        %v453 = vunpack.c.h.b16 %v406
        %v454 = vunpack.c.l.b16 %v407
        %v455 = vunpack.c.h.b16 %v407
        %v456 = vpack.c.b16 %v426, %v424
        %v457 = vpack.c.b16 %v427, %v425
        %v458 = vpack.c.b16 %v430, %v428
        %v459 = vpack.c.b16 %v431, %v429
        %v460 = vpack.c.b16 %v434, %v432
        %v461 = vpack.c.b16 %v435, %v433
        %v462 = vpack.c.b16 %v438, %v436
        %v463 = vpack.c.b16 %v439, %v437
        %v464 = vpack.c.b16 %v442, %v440
        %v465 = vpack.c.b16 %v443, %v441
        %v466 = vpack.c.b16 %v446, %v444
        %v467 = vpack.c.b16 %v447, %v445
        %v468 = vpack.c.b16 %v450, %v448
        %v469 = vpack.c.b16 %v451, %v449
        %v470 = vpack.c.b16 %v454, %v452
        %v471 = vpack.c.b16 %v455, %v453
        %488 = vmatpush.bf16.msra.mxu0 %v470
        %489 = vmatpush.bf16.msra.mxu0 %v468
        %490 = vmatpush.bf16.msra.mxu0 %v466
        %491 = vmatpush.bf16.msra.mxu0 %v464
        %492 = vmatpush.bf16.msra.mxu0 %v462
        %493 = vmatpush.bf16.msra.mxu0 %v460
        %494 = vmatpush.bf16.msra.mxu0 %v458
        %495 = vmatpush.bf16.msra.mxu0 %v456
        %496 = vmatmul.bf16.gmra.mxu0 %v391
        %v497 = vpop.f32.mrf.mxu0
        %v498 = vadd.f32 0.0, %v497
        %v499 = vpop.f32.mrf.mxu0
        %500 = vdwg.mxu0
        %501 = vmatpush.bf16.msra.mxu0 %v471
        %502 = vmatpush.bf16.msra.mxu0 %v469
        %503 = vmatpush.bf16.msra.mxu0 %v467
        %504 = vmatpush.bf16.msra.mxu0 %v465
        %505 = vmatpush.bf16.msra.mxu0 %v463
        %506 = vmatpush.bf16.msra.mxu0 %v461
        %507 = vmatpush.bf16.msra.mxu0 %v459
        %508 = vmatpush.bf16.msra.mxu0 %v457
        %509 = vmatmul.bf16.gmra.mxu0 %v391
        %v510 = vpop.f32.mrf.mxu0
        %v511 = vadd.f32 0.0, %v510
        %v512 = vpop.f32.mrf.mxu0
        %513 = vdwg.mxu0
        %v514 = vld [vmem:[#allocation3] sm:$0xff]
        %v515 = vld [vmem:[#allocation3 + $0x8] sm:$0xff]
        %v516 = vld [vmem:[#allocation3 + $0x10] sm:$0xff]
        %v517 = vld [vmem:[#allocation3 + $0x18] sm:$0xff]
        %v518 = vld [vmem:[#allocation3 + $0x20] sm:$0xff]
        %v519 = vld [vmem:[#allocation3 + $0x28] sm:$0xff]
        %v520 = vld [vmem:[#allocation3 + $0x30] sm:$0xff]
        %v521 = vld [vmem:[#allocation3 + $0x38] sm:$0xff]
        %v522 = vld [vmem:[#allocation3 + $0x40] sm:$0xff]
        %v523 = vld [vmem:[#allocation3 + $0x48] sm:$0xff]
        %v524 = vld [vmem:[#allocation3 + $0x50] sm:$0xff]
        %v525 = vld [vmem:[#allocation3 + $0x58] sm:$0xff]
        %v526 = vld [vmem:[#allocation3 + $0x60] sm:$0xff]
        %v527 = vld [vmem:[#allocation3 + $0x68] sm:$0xff]
        %v528 = vld [vmem:[#allocation3 + $0x70] sm:$0xff]
        %v529 = vld [vmem:[#allocation3 + $0x78] sm:$0xff]
        %v546 = vunpack.c.l.b16 %v514
        %v547 = vunpack.c.h.b16 %v514
        %v548 = vunpack.c.l.b16 %v515
        %v549 = vunpack.c.h.b16 %v515
        %v550 = vunpack.c.l.b16 %v516
        %v551 = vunpack.c.h.b16 %v516
        %v552 = vunpack.c.l.b16 %v517
        %v553 = vunpack.c.h.b16 %v517
        %v554 = vunpack.c.l.b16 %v518
        %v555 = vunpack.c.h.b16 %v518
        %v556 = vunpack.c.l.b16 %v519
        %v557 = vunpack.c.h.b16 %v519
        %v558 = vunpack.c.l.b16 %v520
        %v559 = vunpack.c.h.b16 %v520
        %v560 = vunpack.c.l.b16 %v521
        %v561 = vunpack.c.h.b16 %v521
        %v562 = vunpack.c.l.b16 %v522
        %v563 = vunpack.c.h.b16 %v522
        %v564 = vunpack.c.l.b16 %v523
        %v565 = vunpack.c.h.b16 %v523
        %v566 = vunpack.c.l.b16 %v524
        %v567 = vunpack.c.h.b16 %v524
        %v568 = vunpack.c.l.b16 %v525
        %v569 = vunpack.c.h.b16 %v525
        %v570 = vunpack.c.l.b16 %v526
        %v571 = vunpack.c.h.b16 %v526
        %v572 = vunpack.c.l.b16 %v527
        %v573 = vunpack.c.h.b16 %v527
        %v574 = vunpack.c.l.b16 %v528
        %v575 = vunpack.c.h.b16 %v528
        %v576 = vunpack.c.l.b16 %v529
        %v577 = vunpack.c.h.b16 %v529
        %v578 = vpack.c.b16 %v548, %v546
        %v579 = vpack.c.b16 %v549, %v547
        %v580 = vpack.c.b16 %v552, %v550
        %v581 = vpack.c.b16 %v553, %v551
        %v582 = vpack.c.b16 %v556, %v554
        %v583 = vpack.c.b16 %v557, %v555
        %v584 = vpack.c.b16 %v560, %v558
        %v585 = vpack.c.b16 %v561, %v559
        %v586 = vpack.c.b16 %v564, %v562
        %v587 = vpack.c.b16 %v565, %v563
        %v588 = vpack.c.b16 %v568, %v566
        %v589 = vpack.c.b16 %v569, %v567
        %v590 = vpack.c.b16 %v572, %v570
        %v591 = vpack.c.b16 %v573, %v571
        %v592 = vpack.c.b16 %v576, %v574
        %v593 = vpack.c.b16 %v577, %v575
        %610 = vmatpush.bf16.msra.mxu0 %v592
        %611 = vmatpush.bf16.msra.mxu0 %v590
        %612 = vmatpush.bf16.msra.mxu0 %v588
        %613 = vmatpush.bf16.msra.mxu0 %v586
        %614 = vmatpush.bf16.msra.mxu0 %v584
        %615 = vmatpush.bf16.msra.mxu0 %v582
        %616 = vmatpush.bf16.msra.mxu0 %v580
        %617 = vmatpush.bf16.msra.mxu0 %v578
        %618 = vmatmul.bf16.gmra.mxu0 %v381
        %v619 = vpop.f32.mrf.mxu0
        %v620 = vadd.f32 0.0, %v619
        %v621 = vpop.f32.mrf.mxu0
        %622 = vdwg.mxu0
        %623 = vmatpush.bf16.msra.mxu0 %v593
        %624 = vmatpush.bf16.msra.mxu0 %v591
        %625 = vmatpush.bf16.msra.mxu0 %v589
        %626 = vmatpush.bf16.msra.mxu0 %v587
        %627 = vmatpush.bf16.msra.mxu0 %v585
        %628 = vmatpush.bf16.msra.mxu0 %v583
        %629 = vmatpush.bf16.msra.mxu0 %v581
        %630 = vmatpush.bf16.msra.mxu0 %v579
        %631 = vmatmul.bf16.gmra.mxu0 %v381
        %v632 = vpop.f32.mrf.mxu0
        %v633 = vadd.f32 0.0, %v632
        %v634 = vpop.f32.mrf.mxu0
        %635 = vdwg.mxu0
        %v636 = vadd.f32 %v498, %v620
        %v637 = vld [vmem:[%s5] sm:$0x1]
        %v639 = vperm.slane %v637, 0
        %v641 = vadd.f32 %v636, %v639
        %v642 = vtanh.pop %v641
        %v643 = vld [vmem:[%s6] sm:$0xff]
        %v644 = vld [vmem:[%s6 + $0x8] sm:$0xff]
        %v645 = vld [vmem:[%s6 + $0x10] sm:$0xff]
        %v646 = vld [vmem:[%s6 + $0x18] sm:$0xff]
        %v647 = vld [vmem:[%s6 + $0x20] sm:$0xff]
        %v648 = vld [vmem:[%s6 + $0x28] sm:$0xff]
        %v649 = vld [vmem:[%s6 + $0x30] sm:$0xff]
        %v650 = vld [vmem:[%s6 + $0x38] sm:$0xff]
        %v651 = vld [vmem:[%s6 + $0x40] sm:$0xff]
        %v652 = vld [vmem:[%s6 + $0x48] sm:$0xff]
        %v653 = vld [vmem:[%s6 + $0x50] sm:$0xff]
        %v654 = vld [vmem:[%s6 + $0x58] sm:$0xff]
        %v655 = vld [vmem:[%s6 + $0x60] sm:$0xff]
        %v656 = vld [vmem:[%s6 + $0x68] sm:$0xff]
        %v657 = vld [vmem:[%s6 + $0x70] sm:$0xff]
        %v658 = vld [vmem:[%s6 + $0x78] sm:$0xff]
        %v659 = vld [vmem:[#allocation2] sm:$0x1]
        %v661 = vperm.slane %v659, 0
        %663 = vmatpush.msra.mxu0 %v658
        %664 = vmatpush.msra.mxu0 %v657
        %665 = vmatpush.msra.mxu0 %v656
        %666 = vmatpush.msra.mxu0 %v655
        %667 = vmatpush.msra.mxu0 %v654
        %668 = vmatpush.msra.mxu0 %v653
        %669 = vmatpush.msra.mxu0 %v652
        %670 = vmatpush.msra.mxu0 %v651
        %671 = vmatpush.msra.mxu0 %v650
        %672 = vmatpush.msra.mxu0 %v649
        %673 = vmatpush.msra.mxu0 %v648
        %674 = vmatpush.msra.mxu0 %v647
        %675 = vmatpush.msra.mxu0 %v646
        %676 = vmatpush.msra.mxu0 %v645
        %677 = vmatpush.msra.mxu0 %v644
        %678 = vmatpush.msra.mxu0 %v643
        %679 = vmatmul.f32.gmra.mxu0 %v642
        %v680 = vpop.f32.mrf.mxu0
        %v681 = vadd.f32 %v661, %v680
        %682 = vdwg.mxu0
        %v683 = vmul.f32 %v681, 1.442695
        %v684 = vpow.pop %v683
        %v685 = vadd.f32 %v684, 1.0
        %v686 = vrcp.pop %v685
        %v687 = vmul.f32 %v685, %v686
        %v688 = vsub.f32 1.0, %v687
        %v689 = vmul.f32 %v686, %v688
        %v690 = vadd.f32 %v686, %v689
        %vm691 = vweird.f32 %v685
        %vm692 = vweird.f32 %v686
        %vm693 = vmor %vm691, %vm692
        %v694 = vsel %vm693, %v686, %v690
        %v695 = vand.u32 2147483647, %v685
        %vm696 = vcmp.eq.f32.partialorder %v695, 8.507059e+37
        %v697 = vand.u32 %v685, 2147483648
        %v698 = vor.u32 1.1754944e-38, %v697
        %v699 = vsel %vm696, %v698, %v694
        %v700 = vmul.f32 1.0, %v699
        %v701 = vsub.f32 1.0, %v700
        %703 = vset.pattern.permute.xlu0 0
        %704 = vperm.xlu0 %703, %v700
        %v705 = vpop.permute.xlu0 %704
        %v707 = vmul.f32 %v705, %v511
        %709 = vset.pattern.permute.xlu0 0
        %710 = vperm.xlu0 %709, %v701
        %v711 = vpop.permute.xlu0 %710
        %v713 = vmul.f32 %v711, %v633
        %v714 = vadd.f32 %v707, %v713
        %v715 = vld [vmem:[%s8] sm:$0x1]
        %v717 = vperm.slane %v715, 0
        %v719 = vadd.f32 %v714, %v717
        %v720 = vlaneseq
        %v721 = vand.u32 %v720, 127
        %vm722 = vcmp.eq.s32.totalorder %v721, 7
        %vm723 = vcmp.eq.s32.totalorder %v721, 8
        %v724 = vsel %vm723, %v711, %v719
        %v725 = vsel %vm722, %v705, %v724
        %726 = vst [vmem:[%s368] sm:$0xff] %v725
        %s727 = sand.u32 %s238, 1
        %s728 = scalar_lea.sflag [#allocation5], %s727
        %s729 = sand.u32 %s238, 1
        %s730 = smul.addr %s729, 8
        %s731 = scalar_lea.vmem [#allocation6], %s730
        // Predicated region
        $region61: #{tpu_custom_call.1} parent=55 // pred_check
          %p732 = pneg %p248
        $region62: #{tpu_custom_call.1} parent=55 // pred_check_branch
          %734 = sbr.rel (%p732) target = $region64
        $region63: #{tpu_custom_call.1} parent=55 // pred_region
          %736 = vsyncadd %s728, 0
          %s737 = smul.addr %s26, 8
          %s738 = scalar_lea.hbm %s9, %s737
          %s740 = sshll.u32 %s731, 4
          %s741 = int_to_ptr.vmem [resolvable:$true] %s740
          %s742 = sshll.u32 %s738, 4
          %s743 = int_to_ptr.hbm [resolvable:$true] %s742
          %745 = dma.vmem_to_hbm [thread:$0]  %s741, 128, %s743, %s728
        $region64: #{tpu_custom_call.1} parent=55 // pred_fallthru
          _
      $region56: #{tpu_custom_call.1} parent=5 // pred_fallthru
        _
      %p746 = scmp.le.s32.totalorder 2, %s21
      // Predicated region
      $region65: #{tpu_custom_call.1} parent=5 // pred_check
        %p747 = pneg %p746
      $region66: #{tpu_custom_call.1} parent=5 // pred_check_branch
        %749 = sbr.rel (%p747) target = $region68
      $region67: #{tpu_custom_call.1} parent=5 // pred_region
        %s750 = ssub.s32 %s21, 2
        // Predicated region
        $region69: #{tpu_custom_call.1} parent=67 // pred_check
          %p751 = pneg %p254
        $region70: #{tpu_custom_call.1} parent=67 // pred_check_branch
          %753 = sbr.rel (%p751) target = $region72
        $region71: #{tpu_custom_call.1} parent=67 // pred_region
          %s754 = sand.u32 %s239, 1
          %s755 = scalar_lea.sflag [#allocation5], %s754
          %s756 = sand.u32 %s239, 1
          %s757 = smul.addr %s756, 8
          %s758 = scalar_lea.vmem [#allocation6], %s757
          %760 = dma.done %s755, 128
        $region72: #{tpu_custom_call.1} parent=67 // pred_fallthru
          _
      $region68: #{tpu_custom_call.1} parent=5 // pred_fallthru
        _
    $region6: #{tpu_custom_call.1} parent=1 // loop_footer
      %s25 = sadd.s32 1, %s21
    $region7: #{tpu_custom_call.1} parent=1 // loop_footer_branch
      %20 = sbr.rel target = $region3
    $region8: #{tpu_custom_call.1} parent=1 // loop_exit
      _
    %761 = vsyncpa [#allocation4], 1
    %s762 = scalar_lea.sflag [#allocation4], 1
    %763 = vsyncpa %s762, 1
    %764 = vsyncpa [#allocation5], 1
    %s765 = scalar_lea.sflag [#allocation5], 1
    %766 = vsyncpa %s765, 1

// kernel: tpu_custom_call.1
$region0: #{tpu_custom_call.1}
  #allocation0 [shape = 'u32[]', space=smem, size = 0x4, offset = 0x4, fixed_abs, tag = 'smem constant byte address 0x4 - core index']
  #allocation1 [shape = 'u32[72,128]{1,0:T(1,128)}', space=vmem, size = 0x9000, scoped, tag = 'internal scratch']
  #allocation2 [shape = 'f32[1,1]{1,0:T(1,128)S(1)}', space=vmem, size = 0x200, scoped, tag = 'scoped memory for tpu_custom_call.1']
  %s0 = inlined_call_operand.vmem [shape: f32[16,1], index: 0, kind: input, shape index: {}]
  %s1 = inlined_call_operand.vmem [shape: bf16[16,128], index: 1, kind: input, shape index: {}]
  %s2 = inlined_call_operand.vmem [shape: bf16[16,128], index: 2, kind: input, shape index: {}]
  %s3 = inlined_call_operand.vmem [shape: bf16[128,256], index: 3, kind: input, shape index: {}]
  %s4 = inlined_call_operand.hbm [shape: bf16[128,256], index: 4, kind: input, shape index: {}]
  %s5 = inlined_call_operand.vmem [shape: f32[1,128], index: 5, kind: input, shape index: {}]
  %s6 = inlined_call_operand.vmem [shape: f32[128,1], index: 6, kind: input, shape index: {}]
  %s7 = inlined_call_operand.<no memory space> [shape: f32[1,1], index: 7, kind: input, shape index: {}]
  %s8 = inlined_call_operand.vmem [shape: f32[1,128], index: 8, kind: input, shape index: {}]
  %s9 = inlined_call_operand.hbm [shape: f32[16,128], index: 9, kind: output, shape index: {}]
  %s10 = sld [smem:[#allocation0]]
  $region73: #{tpu_custom_call.1} parent=0
    _
  %s12 = ssub.s32 1, %s10
  %s13 = scalar_select 0, %s12, %s10
  %v14 = vstv %s7
  %15 = vst [vmem:[#allocation2] sm:$0x1] %v14
  $region1: #{tpu_custom_call.1} parent=0
    #allocation3 [shape = 'u8[65536]{0}', space=vmem, size = 0x10000, scoped, tag = 'input window, operand 4, single buffered']
    #allocation4 [shape = 's32[2]{0}', space=sflag, size = 0x8, scoped, tag = 'scoped memory for tpu_custom_call.1']
    #allocation5 [shape = 's32[2]{0}', space=sflag, size = 0x8, scoped, tag = 'scoped memory for tpu_custom_call.1']
    #allocation6 [shape = 'u8[8192]{0}', space=vmem, size = 0x2000, scoped, tag = 'output window, operand 0']
    %16 = vsyncpa [#allocation4], 0
    %17 = vsyncpa [#allocation5], 0
    %s18 = scalar_lea.sflag [#allocation5], 1
    %19 = vsyncpa %s18, 0
    loop: start=0, step=1, limit=4
    $region2: #{tpu_custom_call.1} parent=1 // loop_pre_header
      _
    $region3: #{tpu_custom_call.1} parent=1 // loop_header
      %s21 = sphi 0, %s25
      %p22 = scmp.ge.s32.totalorder %s21, 4
      %s31 = sphi 0, %s33
      %s34 = sphi 0, %s31
      %s35 = sphi 0, %s34
      %s51 = sphi 0, %s35
      %s57 = sphi 0, %s59
      %s60 = sphi 0, %s57
      %s61 = sphi 0, %s60
      %s77 = sphi 0, %s61
      %s83 = sphi 0, %s85
      %s86 = sphi 0, %s83
      %s87 = sphi 0, %s86
      %s103 = sphi 0, %s87
      %s107 = sphi 0, %s107
      %s109 = sphi 0, %s107
      %s110 = sphi 0, %s109
      %s124 = sphi 0, %s110
      %s128 = sphi 0, %s128
      %s130 = sphi 0, %s128
      %s131 = sphi 0, %s130
      %s145 = sphi 0, %s131
      %s149 = sphi 0, %s149
      %s151 = sphi 0, %s149
      %s152 = sphi 0, %s151
      %s166 = sphi 0, %s152
      %s170 = sphi 0, %s170
      %s172 = sphi 0, %s170
      %s173 = sphi 0, %s172
      %s187 = sphi 0, %s173
      %s191 = sphi 0, %s191
      %s193 = sphi 0, %s191
      %s194 = sphi 0, %s193
      %s208 = sphi 0, %s194
      %s212 = sphi 0, %s212
      %s214 = sphi 0, %s212
      %s215 = sphi 0, %s214
      %s229 = sphi 0, %s215
      %s235 = sphi 0, %s237
      %s238 = sphi 0, %s235
      %s239 = sphi 0, %s238
      %s255 = sphi 0, %s239
    $region4: #{tpu_custom_call.1} parent=1 // loop_header_branch
      %24 = sbr.rel (%p22) target = $region8
    $region5: #{tpu_custom_call.1} parent=1 // loop_body
      %s26 = ssub.s32 %s21, 1
      %s27 = ssub.s32 %s21, 2
      %s28 = sadd.s32 %s21, 1
      %s29 = ssub.s32 %s21, %s28
      %p30 = scmp.eq.s32.totalorder %s29, 0
      %s32 = sadd.s32 %s31, 1
      %s33 = scalar_select %p30, %s31, %s32
      %p36 = pneg %p30
      %p37 = scmp.eq.s32.totalorder %s21, 1
      %p38 = por %p36, %p37
      %p39 = scmp.ne.s32.totalorder %s31, %s34
      %p40 = scmp.eq.s32.totalorder %s21, 0
      %p41 = por %p39, %p40
      %p42 = scmp.ne.s32.totalorder %s31, %s34
      %p43 = scmp.eq.s32.totalorder %s26, 1
      %p44 = por %p42, %p43
      %p45 = scmp.ne.s32.totalorder %s34, %s35
      %p46 = scmp.eq.s32.totalorder %s26, 0
      %p47 = por %p45, %p46
      %p48 = scmp.ne.s32.totalorder %s34, %s35
      %p49 = scmp.eq.s32.totalorder %s27, 1
      %p50 = por %p48, %p49
      %p52 = scmp.ne.s32.totalorder %s35, %s51
      %p53 = scmp.eq.s32.totalorder %s27, 0
      %p54 = por %p52, %p53
      %s55 = ssub.s32 %s21, %s28
      %p56 = scmp.eq.s32.totalorder %s55, 0
      %s58 = sadd.s32 %s57, 1
      %s59 = scalar_select %p56, %s57, %s58
      %p62 = pneg %p56
      %p63 = scmp.eq.s32.totalorder %s21, 1
      %p64 = por %p62, %p63
      %p65 = scmp.ne.s32.totalorder %s57, %s60
      %p66 = scmp.eq.s32.totalorder %s21, 0
      %p67 = por %p65, %p66
      %p68 = scmp.ne.s32.totalorder %s57, %s60
      %p69 = scmp.eq.s32.totalorder %s26, 1
      %p70 = por %p68, %p69
      %p71 = scmp.ne.s32.totalorder %s60, %s61
      %p72 = scmp.eq.s32.totalorder %s26, 0
      %p73 = por %p71, %p72
      %p74 = scmp.ne.s32.totalorder %s60, %s61
      %p75 = scmp.eq.s32.totalorder %s27, 1
      %p76 = por %p74, %p75
      %p78 = scmp.ne.s32.totalorder %s61, %s77
      %p79 = scmp.eq.s32.totalorder %s27, 0
      %p80 = por %p78, %p79
      %s81 = ssub.s32 %s21, %s28
      %p82 = scmp.eq.s32.totalorder %s81, 0
      %s84 = sadd.s32 %s83, 1
      %s85 = scalar_select %p82, %s83, %s84
      %p88 = pneg %p82
      %p89 = scmp.eq.s32.totalorder %s21, 1
      %p90 = por %p88, %p89
      %p91 = scmp.ne.s32.totalorder %s83, %s86
      %p92 = scmp.eq.s32.totalorder %s21, 0
      %p93 = por %p91, %p92
      %p94 = scmp.ne.s32.totalorder %s83, %s86
      %p95 = scmp.eq.s32.totalorder %s26, 1
      %p96 = por %p94, %p95
      %p97 = scmp.ne.s32.totalorder %s86, %s87
      %p98 = scmp.eq.s32.totalorder %s26, 0
      %p99 = por %p97, %p98
      %p100 = scmp.ne.s32.totalorder %s86, %s87
      %p101 = scmp.eq.s32.totalorder %s27, 1
      %p102 = por %p100, %p101
      %p104 = scmp.ne.s32.totalorder %s87, %s103
      %p105 = scmp.eq.s32.totalorder %s27, 0
      %p106 = por %p104, %p105
      %s108 = sadd.s32 %s107, 1
      %p111 = scmp.eq.s32.totalorder %s21, 1
      %p112 = scmp.ne.s32.totalorder %s107, %s109
      %p113 = scmp.eq.s32.totalorder %s21, 0
      %p114 = por %p112, %p113
      %p115 = scmp.ne.s32.totalorder %s107, %s109
      %p116 = scmp.eq.s32.totalorder %s26, 1
      %p117 = por %p115, %p116
      %p118 = scmp.ne.s32.totalorder %s109, %s110
      %p119 = scmp.eq.s32.totalorder %s26, 0
      %p120 = por %p118, %p119
      %p121 = scmp.ne.s32.totalorder %s109, %s110
      %p122 = scmp.eq.s32.totalorder %s27, 1
      %p123 = por %p121, %p122
      %p125 = scmp.ne.s32.totalorder %s110, %s124
      %p126 = scmp.eq.s32.totalorder %s27, 0
      %p127 = por %p125, %p126
      %s129 = sadd.s32 %s128, 1
      %p132 = scmp.eq.s32.totalorder %s21, 1
      %p133 = scmp.ne.s32.totalorder %s128, %s130
      %p134 = scmp.eq.s32.totalorder %s21, 0
      %p135 = por %p133, %p134
      %p136 = scmp.ne.s32.totalorder %s128, %s130
      %p137 = scmp.eq.s32.totalorder %s26, 1
      %p138 = por %p136, %p137
      %p139 = scmp.ne.s32.totalorder %s130, %s131
      %p140 = scmp.eq.s32.totalorder %s26, 0
      %p141 = por %p139, %p140
      %p142 = scmp.ne.s32.totalorder %s130, %s131
      %p143 = scmp.eq.s32.totalorder %s27, 1
      %p144 = por %p142, %p143
      %p146 = scmp.ne.s32.totalorder %s131, %s145
      %p147 = scmp.eq.s32.totalorder %s27, 0
      %p148 = por %p146, %p147
      %s150 = sadd.s32 %s149, 1
      %p153 = scmp.eq.s32.totalorder %s21, 1
      %p154 = scmp.ne.s32.totalorder %s149, %s151
      %p155 = scmp.eq.s32.totalorder %s21, 0
      %p156 = por %p154, %p155
      %p157 = scmp.ne.s32.totalorder %s149, %s151
      %p158 = scmp.eq.s32.totalorder %s26, 1
      %p159 = por %p157, %p158
      %p160 = scmp.ne.s32.totalorder %s151, %s152
      %p161 = scmp.eq.s32.totalorder %s26, 0
      %p162 = por %p160, %p161
      %p163 = scmp.ne.s32.totalorder %s151, %s152
      %p164 = scmp.eq.s32.totalorder %s27, 1
      %p165 = por %p163, %p164
      %p167 = scmp.ne.s32.totalorder %s152, %s166
      %p168 = scmp.eq.s32.totalorder %s27, 0
      %p169 = por %p167, %p168
      %s171 = sadd.s32 %s170, 1
      %p174 = scmp.eq.s32.totalorder %s21, 1
      %p175 = scmp.ne.s32.totalorder %s170, %s172
      %p176 = scmp.eq.s32.totalorder %s21, 0
      %p177 = por %p175, %p176
      %p178 = scmp.ne.s32.totalorder %s170, %s172
      %p179 = scmp.eq.s32.totalorder %s26, 1
      %p180 = por %p178, %p179
      %p181 = scmp.ne.s32.totalorder %s172, %s173
      %p182 = scmp.eq.s32.totalorder %s26, 0
      %p183 = por %p181, %p182
      %p184 = scmp.ne.s32.totalorder %s172, %s173
      %p185 = scmp.eq.s32.totalorder %s27, 1
      %p186 = por %p184, %p185
      %p188 = scmp.ne.s32.totalorder %s173, %s187
      %p189 = scmp.eq.s32.totalorder %s27, 0
      %p190 = por %p188, %p189
      %s192 = sadd.s32 %s191, 1
      %p195 = scmp.eq.s32.totalorder %s21, 1
      %p196 = scmp.ne.s32.totalorder %s191, %s193
      %p197 = scmp.eq.s32.totalorder %s21, 0
      %p198 = por %p196, %p197
      %p199 = scmp.ne.s32.totalorder %s191, %s193
      %p200 = scmp.eq.s32.totalorder %s26, 1
      %p201 = por %p199, %p200
      %p202 = scmp.ne.s32.totalorder %s193, %s194
      %p203 = scmp.eq.s32.totalorder %s26, 0
      %p204 = por %p202, %p203
      %p205 = scmp.ne.s32.totalorder %s193, %s194
      %p206 = scmp.eq.s32.totalorder %s27, 1
      %p207 = por %p205, %p206
      %p209 = scmp.ne.s32.totalorder %s194, %s208
      %p210 = scmp.eq.s32.totalorder %s27, 0
      %p211 = por %p209, %p210
      %s213 = sadd.s32 %s212, 1
      %p216 = scmp.eq.s32.totalorder %s21, 1
      %p217 = scmp.ne.s32.totalorder %s212, %s214
      %p218 = scmp.eq.s32.totalorder %s21, 0
      %p219 = por %p217, %p218
      %p220 = scmp.ne.s32.totalorder %s212, %s214
      %p221 = scmp.eq.s32.totalorder %s26, 1
      %p222 = por %p220, %p221
      %p223 = scmp.ne.s32.totalorder %s214, %s215
      %p224 = scmp.eq.s32.totalorder %s26, 0
      %p225 = por %p223, %p224
      %p226 = scmp.ne.s32.totalorder %s214, %s215
      %p227 = scmp.eq.s32.totalorder %s27, 1
      %p228 = por %p226, %p227
      %p230 = scmp.ne.s32.totalorder %s215, %s229
      %p231 = scmp.eq.s32.totalorder %s27, 0
      %p232 = por %p230, %p231
      %s233 = ssub.s32 %s21, %s28
      %p234 = scmp.eq.s32.totalorder %s233, 0
      %s236 = sadd.s32 %s235, 1
      %s237 = scalar_select %p234, %s235, %s236
      %p240 = pneg %p234
      %p241 = scmp.eq.s32.totalorder %s21, 1
      %p242 = por %p240, %p241
      %p243 = scmp.ne.s32.totalorder %s235, %s238
      %p244 = scmp.eq.s32.totalorder %s21, 0
      %p245 = por %p243, %p244
      %p246 = scmp.ne.s32.totalorder %s235, %s238
      %p247 = scmp.eq.s32.totalorder %s26, 1
      %p248 = por %p246, %p247
      %p249 = scmp.ne.s32.totalorder %s238, %s239
      %p250 = scmp.eq.s32.totalorder %s26, 0
      %p251 = por %p249, %p250
      %p252 = scmp.ne.s32.totalorder %s238, %s239
      %p253 = scmp.eq.s32.totalorder %s27, 1
      %p254 = por %p252, %p253
      %p256 = scmp.ne.s32.totalorder %s239, %s255
      %p257 = scmp.eq.s32.totalorder %s27, 0
      %p258 = por %p256, %p257
      %p259 = scmp.le.s32.totalorder 1, %s21
      %p260 = scmp.lt.s32.totalorder %s21, 3
      %p261 = pnand %p259, %p260
      %p262 = pneg %p261
      // Predicated region
      $region9: #{tpu_custom_call.1} parent=5 // pred_check
        _
      $region10: #{tpu_custom_call.1} parent=5 // pred_check_branch
        %264 = sbr.rel (%p261) target = $region12
      $region11: #{tpu_custom_call.1} parent=5 // pred_region
        %s265 = ssub.s32 %s21, 1
        // Predicated region
        $region13: #{tpu_custom_call.1} parent=11 // pred_check
          %p266 = pneg %p120
        $region14: #{tpu_custom_call.1} parent=11 // pred_check_branch
          %268 = sbr.rel (%p266) target = $region16
        $region15: #{tpu_custom_call.1} parent=11 // pred_region
          _
        $region16: #{tpu_custom_call.1} parent=11 // pred_fallthru
          _
        // Predicated region
        $region17: #{tpu_custom_call.1} parent=11 // pred_check
          %p269 = pneg %p141
        $region18: #{tpu_custom_call.1} parent=11 // pred_check_branch
          %271 = sbr.rel (%p269) target = $region20
        $region19: #{tpu_custom_call.1} parent=11 // pred_region
          %273 = vsyncadd [#allocation4], 0
          %s274 = sshll.u32 %s4, 4
          %s275 = int_to_ptr.hbm [resolvable:$true] %s274
          %s276 = sshll.u32 [#allocation3], 4
          %s277 = int_to_ptr.vmem [resolvable:$true] %s276
          %282 = dma.hbm_to_vmem [thread:$0]  %s275, 2048, %s277, [#allocation4], 128, 128, 8
        $region20: #{tpu_custom_call.1} parent=11 // pred_fallthru
          _
        // Predicated region
        $region21: #{tpu_custom_call.1} parent=11 // pred_check
          %p283 = pneg %p162
        $region22: #{tpu_custom_call.1} parent=11 // pred_check_branch
          %285 = sbr.rel (%p283) target = $region24
        $region23: #{tpu_custom_call.1} parent=11 // pred_region
          _
        $region24: #{tpu_custom_call.1} parent=11 // pred_fallthru
          _
        // Predicated region
        $region25: #{tpu_custom_call.1} parent=11 // pred_check
          %p286 = pneg %p183
        $region26: #{tpu_custom_call.1} parent=11 // pred_check_branch
          %288 = sbr.rel (%p286) target = $region28
        $region27: #{tpu_custom_call.1} parent=11 // pred_region
          _
        $region28: #{tpu_custom_call.1} parent=11 // pred_fallthru
          _
        // Predicated region
        $region29: #{tpu_custom_call.1} parent=11 // pred_check
          %p289 = pneg %p204
        $region30: #{tpu_custom_call.1} parent=11 // pred_check_branch
          %291 = sbr.rel (%p289) target = $region32
        $region31: #{tpu_custom_call.1} parent=11 // pred_region
          _
        $region32: #{tpu_custom_call.1} parent=11 // pred_fallthru
          _
        // Predicated region
        $region33: #{tpu_custom_call.1} parent=11 // pred_check
          %p292 = pneg %p225
        $region34: #{tpu_custom_call.1} parent=11 // pred_check_branch
          %294 = sbr.rel (%p292) target = $region36
        $region35: #{tpu_custom_call.1} parent=11 // pred_region
          _
        $region36: #{tpu_custom_call.1} parent=11 // pred_fallthru
          _
      $region12: #{tpu_custom_call.1} parent=5 // pred_fallthru
        _
      %p295 = scmp.lt.s32.totalorder %s21, 2
      // Predicated region
      $region37: #{tpu_custom_call.1} parent=5 // pred_check
        %p296 = pneg %p295
      $region38: #{tpu_custom_call.1} parent=5 // pred_check_branch
        %298 = sbr.rel (%p296) target = $region40
      $region39: #{tpu_custom_call.1} parent=5 // pred_region
        // Predicated region
        $region41: #{tpu_custom_call.1} parent=39 // pred_check
          %p299 = pneg %p41
        $region42: #{tpu_custom_call.1} parent=39 // pred_check_branch
          %301 = sbr.rel (%p299) target = $region44
        $region43: #{tpu_custom_call.1} parent=39 // pred_region
          %p302 = scmp.lt.s32.totalorder %s21, 1
          %s303 = scalar_select %p302, %s21, 1
          %s304 = smul.addr %s303, 8
          %s305 = scalar_lea.vmem %s0, %s304
        $region44: #{tpu_custom_call.1} parent=39 // pred_fallthru
          _
        // Predicated region
        $region45: #{tpu_custom_call.1} parent=39 // pred_check
          %p306 = pneg %p67
        $region46: #{tpu_custom_call.1} parent=39 // pred_check_branch
          %308 = sbr.rel (%p306) target = $region48
        $region47: #{tpu_custom_call.1} parent=39 // pred_region
          %p309 = scmp.lt.s32.totalorder %s21, 1
          %s310 = scalar_select %p309, %s21, 1
          %s311 = smul.addr %s310, 4
          %s312 = scalar_lea.vmem %s1, %s311
        $region48: #{tpu_custom_call.1} parent=39 // pred_fallthru
          _
        // Predicated region
        $region49: #{tpu_custom_call.1} parent=39 // pred_check
          %p313 = pneg %p93
        $region50: #{tpu_custom_call.1} parent=39 // pred_check_branch
          %315 = sbr.rel (%p313) target = $region52
        $region51: #{tpu_custom_call.1} parent=39 // pred_region
          %p316 = scmp.lt.s32.totalorder %s21, 1
          %s317 = scalar_select %p316, %s21, 1
          %s318 = smul.addr %s317, 4
          %s319 = scalar_lea.vmem %s2, %s318
        $region52: #{tpu_custom_call.1} parent=39 // pred_fallthru
          _
      $region40: #{tpu_custom_call.1} parent=5 // pred_fallthru
        _
      %p320 = scmp.le.s32.totalorder 1, %s21
      %p321 = scmp.lt.s32.totalorder %s21, 3
      %p322 = pnand %p320, %p321
      %p323 = pneg %p322
      // Predicated region
      $region53: #{tpu_custom_call.1} parent=5 // pred_check
        _
      $region54: #{tpu_custom_call.1} parent=5 // pred_check_branch
        %325 = sbr.rel (%p322) target = $region56
      $region55: #{tpu_custom_call.1} parent=5 // pred_region
        %s326 = ssub.s32 %s21, 1
        // Predicated region
        $region57: #{tpu_custom_call.1} parent=55 // pred_check
          %p327 = pneg %p141
        $region58: #{tpu_custom_call.1} parent=55 // pred_check_branch
          %329 = sbr.rel (%p327) target = $region60
        $region59: #{tpu_custom_call.1} parent=55 // pred_region
          %331 = dma.done [#allocation4], 2048
        $region60: #{tpu_custom_call.1} parent=55 // pred_fallthru
          _
        %p332 = scmp.lt.s32.totalorder %s26, 1
        %s333 = scalar_select %p332, %s26, 1
        %s334 = smul.addr %s333, 8
        %s335 = scalar_lea.vmem %s0, %s334
        %p336 = pneg %p47
        %p337 = pneg %p44
        %p338 = scmp.lt.s32.totalorder %s26, 1
        %s339 = scalar_select %p338, %s26, 1
        %s340 = smul.addr %s339, 4
        %s341 = scalar_lea.vmem %s1, %s340
        %p342 = pneg %p73
        %p343 = pneg %p70
        %p344 = scmp.lt.s32.totalorder %s26, 1
        %s345 = scalar_select %p344, %s26, 1
        %s346 = smul.addr %s345, 4
        %s347 = scalar_lea.vmem %s2, %s346
        %p348 = pneg %p99
        %p349 = pneg %p96
        %p350 = pneg %p120
        %p351 = pneg %p117
        %p352 = pneg %p141
        %p353 = pneg %p138
        %p354 = pneg %p162
        %p355 = pneg %p159
        %p356 = pneg %p183
        %p357 = pneg %p180
        %p358 = pneg %p204
        %p359 = pneg %p201
        %p360 = pneg %p225
        %p361 = pneg %p222
        %p362 = pneg %p251
        %p363 = pneg %p248
        %s364 = sand.u32 %s238, 1
        %s365 = scalar_lea.sflag [#allocation5], %s364
        %s366 = sand.u32 %s238, 1
        %s367 = smul.addr %s366, 8
        %s368 = scalar_lea.vmem [#allocation6], %s367
        %p369 = scmp.lt.s32.totalorder %s26, 1
        %s370 = scalar_select %p369, %s26, 1
        %s371 = smul.addr %s370, 8
        %s372 = scalar_lea.vmem %s0, %s371
        %p373 = scmp.lt.s32.totalorder %s26, 1
        %s374 = scalar_select %p373, %s26, 1
        %s375 = smul.addr %s374, 4
        %s376 = scalar_lea.vmem %s1, %s375
        %p377 = scmp.lt.s32.totalorder %s26, 1
        %s378 = scalar_select %p377, %s26, 1
        %s379 = smul.addr %s378, 4
        %s380 = scalar_lea.vmem %s2, %s379
        %v381 = vld [vmem:[%s380] sm:$0xf]
        %v382 = vld [vmem:[%s372] sm:$0xff]
        %vm383 = vcmp.gt.f32.partialorder %v382, 0.5
        %v384 = vld [vmem:[%s376] sm:$0xf]
        %v385 = vsel %vm383, 1, 0
        %386 = vset.pattern.permute.xlu0 0
        %387 = vperm.xlu0 %386, %v385
        %v388 = vpop.permute.xlu0 %387
        %vm389 = vcmp.eq.s32.totalorder %v388, 1
        %vm390 = vmpackc.low %vm389, %vm389
        %v391 = vsel %vm390, %v384, %v381
        %v392 = vld [vmem:[%s3] sm:$0xff]
        %v393 = vld [vmem:[%s3 + $0x8] sm:$0xff]
        %v394 = vld [vmem:[%s3 + $0x10] sm:$0xff]
        %v395 = vld [vmem:[%s3 + $0x18] sm:$0xff]
        %v396 = vld [vmem:[%s3 + $0x20] sm:$0xff]
        %v397 = vld [vmem:[%s3 + $0x28] sm:$0xff]
        %v398 = vld [vmem:[%s3 + $0x30] sm:$0xff]
        %v399 = vld [vmem:[%s3 + $0x38] sm:$0xff]
        %v400 = vld [vmem:[%s3 + $0x40] sm:$0xff]
        %v401 = vld [vmem:[%s3 + $0x48] sm:$0xff]
        %v402 = vld [vmem:[%s3 + $0x50] sm:$0xff]
        %v403 = vld [vmem:[%s3 + $0x58] sm:$0xff]
        %v404 = vld [vmem:[%s3 + $0x60] sm:$0xff]
        %v405 = vld [vmem:[%s3 + $0x68] sm:$0xff]
        %v406 = vld [vmem:[%s3 + $0x70] sm:$0xff]
        %v407 = vld [vmem:[%s3 + $0x78] sm:$0xff]
        %v424 = vunpack.c.l.b16 %v392
        %v425 = vunpack.c.h.b16 %v392
        %v426 = vunpack.c.l.b16 %v393
        %v427 = vunpack.c.h.b16 %v393
        %v428 = vunpack.c.l.b16 %v394
        %v429 = vunpack.c.h.b16 %v394
        %v430 = vunpack.c.l.b16 %v395
        %v431 = vunpack.c.h.b16 %v395
        %v432 = vunpack.c.l.b16 %v396
        %v433 = vunpack.c.h.b16 %v396
        %v434 = vunpack.c.l.b16 %v397
        %v435 = vunpack.c.h.b16 %v397
        %v436 = vunpack.c.l.b16 %v398
        %v437 = vunpack.c.h.b16 %v398
        %v438 = vunpack.c.l.b16 %v399
        %v439 = vunpack.c.h.b16 %v399
        %v440 = vunpack.c.l.b16 %v400
        %v441 = vunpack.c.h.b16 %v400
        %v442 = vunpack.c.l.b16 %v401
        %v443 = vunpack.c.h.b16 %v401
        %v444 = vunpack.c.l.b16 %v402
        %v445 = vunpack.c.h.b16 %v402
        %v446 = vunpack.c.l.b16 %v403
        %v447 = vunpack.c.h.b16 %v403
        %v448 = vunpack.c.l.b16 %v404
        %v449 = vunpack.c.h.b16 %v404
        %v450 = vunpack.c.l.b16 %v405
        %v451 = vunpack.c.h.b16 %v405
        %v452 = vunpack.c.l.b16 %v406
        %v453 = vunpack.c.h.b16 %v406
        %v454 = vunpack.c.l.b16 %v407
        %v455 = vunpack.c.h.b16 %v407
        %v456 = vpack.c.b16 %v426, %v424
        %v457 = vpack.c.b16 %v427, %v425
        %v458 = vpack.c.b16 %v430, %v428
        %v459 = vpack.c.b16 %v431, %v429
        %v460 = vpack.c.b16 %v434, %v432
        %v461 = vpack.c.b16 %v435, %v433
        %v462 = vpack.c.b16 %v438, %v436
        %v463 = vpack.c.b16 %v439, %v437
        %v464 = vpack.c.b16 %v442, %v440
        %v465 = vpack.c.b16 %v443, %v441
        %v466 = vpack.c.b16 %v446, %v444
        %v467 = vpack.c.b16 %v447, %v445
        %v468 = vpack.c.b16 %v450, %v448
        %v469 = vpack.c.b16 %v451, %v449
        %v470 = vpack.c.b16 %v454, %v452
        %v471 = vpack.c.b16 %v455, %v453
        %488 = vmatpush.bf16.msra.mxu0 %v470
        %489 = vmatpush.bf16.msra.mxu0 %v468
        %490 = vmatpush.bf16.msra.mxu0 %v466
        %491 = vmatpush.bf16.msra.mxu0 %v464
        %492 = vmatpush.bf16.msra.mxu0 %v462
        %493 = vmatpush.bf16.msra.mxu0 %v460
        %494 = vmatpush.bf16.msra.mxu0 %v458
        %495 = vmatpush.bf16.msra.mxu0 %v456
        %496 = vmatmul.bf16.gmra.mxu0 %v391
        %v497 = vpop.f32.mrf.mxu0
        %v498 = vadd.f32 0.0, %v497
        %v499 = vpop.f32.mrf.mxu0
        %500 = vdwg.mxu0
        %501 = vmatpush.bf16.msra.mxu0 %v471
        %502 = vmatpush.bf16.msra.mxu0 %v469
        %503 = vmatpush.bf16.msra.mxu0 %v467
        %504 = vmatpush.bf16.msra.mxu0 %v465
        %505 = vmatpush.bf16.msra.mxu0 %v463
        %506 = vmatpush.bf16.msra.mxu0 %v461
        %507 = vmatpush.bf16.msra.mxu0 %v459
        %508 = vmatpush.bf16.msra.mxu0 %v457
        %509 = vmatmul.bf16.gmra.mxu0 %v391
        %v510 = vpop.f32.mrf.mxu0
        %v511 = vadd.f32 0.0, %v510
        %v512 = vpop.f32.mrf.mxu0
        %513 = vdwg.mxu0
        %v514 = vld [vmem:[#allocation3] sm:$0xff]
        %v515 = vld [vmem:[#allocation3 + $0x8] sm:$0xff]
        %v516 = vld [vmem:[#allocation3 + $0x10] sm:$0xff]
        %v517 = vld [vmem:[#allocation3 + $0x18] sm:$0xff]
        %v518 = vld [vmem:[#allocation3 + $0x20] sm:$0xff]
        %v519 = vld [vmem:[#allocation3 + $0x28] sm:$0xff]
        %v520 = vld [vmem:[#allocation3 + $0x30] sm:$0xff]
        %v521 = vld [vmem:[#allocation3 + $0x38] sm:$0xff]
        %v522 = vld [vmem:[#allocation3 + $0x40] sm:$0xff]
        %v523 = vld [vmem:[#allocation3 + $0x48] sm:$0xff]
        %v524 = vld [vmem:[#allocation3 + $0x50] sm:$0xff]
        %v525 = vld [vmem:[#allocation3 + $0x58] sm:$0xff]
        %v526 = vld [vmem:[#allocation3 + $0x60] sm:$0xff]
        %v527 = vld [vmem:[#allocation3 + $0x68] sm:$0xff]
        %v528 = vld [vmem:[#allocation3 + $0x70] sm:$0xff]
        %v529 = vld [vmem:[#allocation3 + $0x78] sm:$0xff]
        %v546 = vunpack.c.l.b16 %v514
        %v547 = vunpack.c.h.b16 %v514
        %v548 = vunpack.c.l.b16 %v515
        %v549 = vunpack.c.h.b16 %v515
        %v550 = vunpack.c.l.b16 %v516
        %v551 = vunpack.c.h.b16 %v516
        %v552 = vunpack.c.l.b16 %v517
        %v553 = vunpack.c.h.b16 %v517
        %v554 = vunpack.c.l.b16 %v518
        %v555 = vunpack.c.h.b16 %v518
        %v556 = vunpack.c.l.b16 %v519
        %v557 = vunpack.c.h.b16 %v519
        %v558 = vunpack.c.l.b16 %v520
        %v559 = vunpack.c.h.b16 %v520
        %v560 = vunpack.c.l.b16 %v521
        %v561 = vunpack.c.h.b16 %v521
        %v562 = vunpack.c.l.b16 %v522
        %v563 = vunpack.c.h.b16 %v522
        %v564 = vunpack.c.l.b16 %v523
        %v565 = vunpack.c.h.b16 %v523
        %v566 = vunpack.c.l.b16 %v524
        %v567 = vunpack.c.h.b16 %v524
        %v568 = vunpack.c.l.b16 %v525
        %v569 = vunpack.c.h.b16 %v525
        %v570 = vunpack.c.l.b16 %v526
        %v571 = vunpack.c.h.b16 %v526
        %v572 = vunpack.c.l.b16 %v527
        %v573 = vunpack.c.h.b16 %v527
        %v574 = vunpack.c.l.b16 %v528
        %v575 = vunpack.c.h.b16 %v528
        %v576 = vunpack.c.l.b16 %v529
        %v577 = vunpack.c.h.b16 %v529
        %v578 = vpack.c.b16 %v548, %v546
        %v579 = vpack.c.b16 %v549, %v547
        %v580 = vpack.c.b16 %v552, %v550
        %v581 = vpack.c.b16 %v553, %v551
        %v582 = vpack.c.b16 %v556, %v554
        %v583 = vpack.c.b16 %v557, %v555
        %v584 = vpack.c.b16 %v560, %v558
        %v585 = vpack.c.b16 %v561, %v559
        %v586 = vpack.c.b16 %v564, %v562
        %v587 = vpack.c.b16 %v565, %v563
        %v588 = vpack.c.b16 %v568, %v566
        %v589 = vpack.c.b16 %v569, %v567
        %v590 = vpack.c.b16 %v572, %v570
        %v591 = vpack.c.b16 %v573, %v571
        %v592 = vpack.c.b16 %v576, %v574
        %v593 = vpack.c.b16 %v577, %v575
        %610 = vmatpush.bf16.msra.mxu0 %v592
        %611 = vmatpush.bf16.msra.mxu0 %v590
        %612 = vmatpush.bf16.msra.mxu0 %v588
        %613 = vmatpush.bf16.msra.mxu0 %v586
        %614 = vmatpush.bf16.msra.mxu0 %v584
        %615 = vmatpush.bf16.msra.mxu0 %v582
        %616 = vmatpush.bf16.msra.mxu0 %v580
        %617 = vmatpush.bf16.msra.mxu0 %v578
        %618 = vmatmul.bf16.gmra.mxu0 %v381
        %v619 = vpop.f32.mrf.mxu0
        %v620 = vadd.f32 0.0, %v619
        %v621 = vpop.f32.mrf.mxu0
        %622 = vdwg.mxu0
        %623 = vmatpush.bf16.msra.mxu0 %v593
        %624 = vmatpush.bf16.msra.mxu0 %v591
        %625 = vmatpush.bf16.msra.mxu0 %v589
        %626 = vmatpush.bf16.msra.mxu0 %v587
        %627 = vmatpush.bf16.msra.mxu0 %v585
        %628 = vmatpush.bf16.msra.mxu0 %v583
        %629 = vmatpush.bf16.msra.mxu0 %v581
        %630 = vmatpush.bf16.msra.mxu0 %v579
        %631 = vmatmul.bf16.gmra.mxu0 %v381
        %v632 = vpop.f32.mrf.mxu0
        %v633 = vadd.f32 0.0, %v632
        %v634 = vpop.f32.mrf.mxu0
        %635 = vdwg.mxu0
        %v636 = vadd.f32 %v498, %v620
        %v637 = vld [vmem:[%s5] sm:$0x1]
        %v639 = vperm.slane %v637, 0
        %v641 = vadd.f32 %v636, %v639
        %v642 = vtanh.pop %v641
        %v643 = vld [vmem:[%s6] sm:$0xff]
        %v644 = vld [vmem:[%s6 + $0x8] sm:$0xff]
        %v645 = vld [vmem:[%s6 + $0x10] sm:$0xff]
        %v646 = vld [vmem:[%s6 + $0x18] sm:$0xff]
        %v647 = vld [vmem:[%s6 + $0x20] sm:$0xff]
        %v648 = vld [vmem:[%s6 + $0x28] sm:$0xff]
        %v649 = vld [vmem:[%s6 + $0x30] sm:$0xff]
        %v650 = vld [vmem:[%s6 + $0x38] sm:$0xff]
        %v651 = vld [vmem:[%s6 + $0x40] sm:$0xff]
        %v652 = vld [vmem:[%s6 + $0x48] sm:$0xff]
        %v653 = vld [vmem:[%s6 + $0x50] sm:$0xff]
        %v654 = vld [vmem:[%s6 + $0x58] sm:$0xff]
        %v655 = vld [vmem:[%s6 + $0x60] sm:$0xff]
        %v656 = vld [vmem:[%s6 + $0x68] sm:$0xff]
        %v657 = vld [vmem:[%s6 + $0x70] sm:$0xff]
        %v658 = vld [vmem:[%s6 + $0x78] sm:$0xff]
        %v659 = vld [vmem:[#allocation2] sm:$0x1]
        %v661 = vperm.slane %v659, 0
        %663 = vmatpush.msra.mxu0 %v658
        %664 = vmatpush.msra.mxu0 %v657
        %665 = vmatpush.msra.mxu0 %v656
        %666 = vmatpush.msra.mxu0 %v655
        %667 = vmatpush.msra.mxu0 %v654
        %668 = vmatpush.msra.mxu0 %v653
        %669 = vmatpush.msra.mxu0 %v652
        %670 = vmatpush.msra.mxu0 %v651
        %671 = vmatpush.msra.mxu0 %v650
        %672 = vmatpush.msra.mxu0 %v649
        %673 = vmatpush.msra.mxu0 %v648
        %674 = vmatpush.msra.mxu0 %v647
        %675 = vmatpush.msra.mxu0 %v646
        %676 = vmatpush.msra.mxu0 %v645
        %677 = vmatpush.msra.mxu0 %v644
        %678 = vmatpush.msra.mxu0 %v643
        %679 = vmatmul.f32.gmra.mxu0 %v642
        %v680 = vpop.f32.mrf.mxu0
        %v681 = vadd.f32 %v661, %v680
        %682 = vdwg.mxu0
        %v683 = vmul.f32 %v681, 1.442695
        %v684 = vpow.pop %v683
        %v685 = vadd.f32 %v684, 1.0
        %v686 = vrcp.pop %v685
        %v687 = vmul.f32 %v685, %v686
        %v688 = vsub.f32 1.0, %v687
        %v689 = vmul.f32 %v686, %v688
        %v690 = vadd.f32 %v686, %v689
        %vm691 = vweird.f32 %v685
        %vm692 = vweird.f32 %v686
        %vm693 = vmor %vm691, %vm692
        %v694 = vsel %vm693, %v686, %v690
        %v695 = vand.u32 2147483647, %v685
        %vm696 = vcmp.eq.f32.partialorder %v695, 8.507059e+37
        %v697 = vand.u32 %v685, 2147483648
        %v698 = vor.u32 1.1754944e-38, %v697
        %v699 = vsel %vm696, %v698, %v694
        %v700 = vmul.f32 1.0, %v699
        %v701 = vsub.f32 1.0, %v700
        %703 = vset.pattern.permute.xlu0 0
        %704 = vperm.xlu0 %703, %v700
        %v705 = vpop.permute.xlu0 %704
        %v707 = vmul.f32 %v705, %v511
        %709 = vset.pattern.permute.xlu0 0
        %710 = vperm.xlu0 %709, %v701
        %v711 = vpop.permute.xlu0 %710
        %v713 = vmul.f32 %v711, %v633
        %v714 = vadd.f32 %v707, %v713
        %v715 = vld [vmem:[%s8] sm:$0x1]
        %v717 = vperm.slane %v715, 0
        %v719 = vadd.f32 %v714, %v717
        %v720 = vlaneseq
        %v721 = vand.u32 %v720, 127
        %vm722 = vcmp.eq.s32.totalorder %v721, 7
        %vm723 = vcmp.eq.s32.totalorder %v721, 8
        %v724 = vsel %vm723, %v711, %v719
        %v725 = vsel %vm722, %v705, %v724
        %726 = vst [vmem:[%s368] sm:$0xff] %v725
        %s727 = sand.u32 %s238, 1
        %s728 = scalar_lea.sflag [#allocation5], %s727
        %s729 = sand.u32 %s238, 1
        %s730 = smul.addr %s729, 8
        %s731 = scalar_lea.vmem [#allocation6], %s730
        // Predicated region
        $region61: #{tpu_custom_call.1} parent=55 // pred_check
          %p732 = pneg %p248
        $region62: #{tpu_custom_call.1} parent=55 // pred_check_branch
          %734 = sbr.rel (%p732) target = $region64
        $region63: #{tpu_custom_call.1} parent=55 // pred_region
          %736 = vsyncadd %s728, 0
          %s737 = smul.addr %s26, 8
          %s738 = scalar_lea.hbm %s9, %s737
          %s740 = sshll.u32 %s731, 4
          %s741 = int_to_ptr.vmem [resolvable:$true] %s740
          %s742 = sshll.u32 %s738, 4
          %s743 = int_to_ptr.hbm [resolvable:$true] %s742
          %745 = dma.vmem_to_hbm [thread:$0]  %s741, 128, %s743, %s728
        $region64: #{tpu_custom_call.1} parent=55 // pred_fallthru
          _
      $region56: #{tpu_custom_call.1} parent=5 // pred_fallthru
        _
      %p746 = scmp.le.s32.totalorder 2, %s21
      // Predicated region
      $region65: #{tpu_custom_call.1} parent=5 // pred_check
        %p747 = pneg %p746
      $region66: #{tpu_custom_call.1} parent=5 // pred_check_branch
        %749 = sbr.rel (%p747) target = $region68
      $region67: #{tpu_custom_call.1} parent=5 // pred_region
        %s750 = ssub.s32 %s21, 2
        // Predicated region
        $region69: #{tpu_custom_call.1} parent=67 // pred_check
          %p751 = pneg %p254
        $region70: #{tpu_custom_call.1} parent=67 // pred_check_branch
          %753 = sbr.rel (%p751) target = $region72
        $region71: #{tpu_custom_call.1} parent=67 // pred_region
          %s754 = sand.u32 %s239, 1
          %s755 = scalar_lea.sflag [#allocation5], %s754
          %s756 = sand.u32 %s239, 1
          %s757 = smul.addr %s756, 8
          %s758 = scalar_lea.vmem [#allocation6], %s757
          %760 = dma.done %s755, 128
        $region72: #{tpu_custom_call.1} parent=67 // pred_fallthru
          _
      $region68: #{tpu_custom_call.1} parent=5 // pred_fallthru
        _
    $region6: #{tpu_custom_call.1} parent=1 // loop_footer
      %s25 = sadd.s32 1, %s21
    $region7: #{tpu_custom_call.1} parent=1 // loop_footer_branch
      %20 = sbr.rel target = $region3
    $region8: #{tpu_custom_call.1} parent=1 // loop_exit
      _
    %761 = vsyncpa [#allocation4], 1
    %s762 = scalar_lea.sflag [#allocation4], 1
    %763 = vsyncpa %s762, 1
    %764 = vsyncpa [#allocation5], 1
    %s765 = scalar_lea.sflag [#allocation5], 1
    %766 = vsyncpa %s765, 1

</llo_original>
